<compile_context>
chip_gen: v7x
topology: tpu7x:2x2x1
jax: 0.10.0
libtpu: 0.0.40
codegen_flags: <defaults>
</compile_context>

<pallas_src>
import jax
import jax.numpy as jnp
from jax import lax
from jax.experimental import pallas as pl
from jax.experimental.pallas import tpu as pltpu


def _round_up(x, m):
    return (x + m - 1) // m * m


def _self_attn_kernel(x_ref, q_ref, k_ref, v_ref, gamma_ref, out_ref, attn_ref):
    """One (batch b, query-tile qi) grid step.

    x_ref:    (TQ, C)      f32   residual rows for this tile
    q_ref:    (TQ, Cp_pad) compute dtype, projected queries for this tile
    k_ref:    (N,  Cp_pad) compute dtype, full projected keys   (resident per batch)
    v_ref:    (N,  C)      compute dtype, full projected values (resident per batch)
    gamma_ref:(1, 1)       f32 scalar in SMEM
    out_ref:  (TQ, C)      f32
    attn_ref: (TQ, N)      attn dtype (bf16 by default)
    """
    # energy[i, j] = <q_i, k_j>  (matches bmm(proj_query, proj_key));
    # contract the last axes directly so no k transpose / relayout is needed.
    energy = lax.dot_general(
        q_ref[...], k_ref[...],
        dimension_numbers=(((1,), (1,)), ((), ())),
        preferred_element_type=jnp.float32)                         # (TQ, N) f32

    # Numerically stable row softmax (same math as nn.Softmax(dim=-1)).
    energy = energy - jnp.max(energy, axis=-1, keepdims=True)
    p = jnp.exp(energy)
    denom = jnp.sum(p, axis=-1, keepdims=True)
    r = pl.reciprocal(denom, approx=True)       # EUP vrcp (free slot)
    r = r * (2.0 - denom * r)                   # 1 Newton step -> ~f32-exact
    attn = p * r                                                    # (TQ, N) f32

    # out[i, c] = sum_j attn[i, j] * v[j, c]
    # (matches bmm(value, attention.permute(0, 2, 1)) in NC layout).
    # Feed the MXU in the compute dtype (bf16 by default), accumulate in f32.
    out = jnp.dot(attn.astype(v_ref.dtype), v_ref[...],
                  preferred_element_type=jnp.float32)               # (TQ, C) f32

    gamma = gamma_ref[0, 0]
    out_ref[...] = gamma * out + x_ref[...]
    attn_ref[...] = attn.astype(attn_ref.dtype)


def _vmem_footprint_bytes(tq, n, c, cp_pad, compute_bytes, attn_bytes):
    f32 = 4
    x_blk = 2 * tq * c * f32                        # residual tile (dbl-buffered)
    q_blk = 2 * tq * cp_pad * compute_bytes
    k_res = 2 * n * cp_pad * compute_bytes          # resident per batch
    v_res = 2 * n * c * compute_bytes               # resident per batch
    out_blk = 2 * tq * c * f32
    attn_blk = 2 * tq * n * attn_bytes
    temps = 3 * tq * n * f32                        # energy / p / attn temporaries
    return x_blk + q_blk + k_res + v_res + out_blk + attn_blk + temps


def _tpu_vmem_capacity_bytes(default=64 << 20):
    try:
        cap = int(pltpu.get_tpu_info().vmem_capacity_bytes)
        if cap > 0:
            return cap
    except Exception:
        pass
    return default


def self_attn_forward(x_nchw, params, *, tq=None,
                      compute_dtype=jnp.bfloat16,
                      attn_dtype=jnp.bfloat16,
                      vmem_budget_bytes=None):
    """x_nchw: (B, C, W, H) float32.  Returns (out_nchw, attention) like the torch module.

    compute_dtype / attn_dtype = float32 gives an exact (1e-5) mode; the
    bfloat16 defaults are the fast path (bf16 MXU operands, bf16 attention-map
    writeback) with f32 accumulation everywhere.
    """
    B, C, W, H = x_nchw.shape
    N = W * H
    Cp = C // 8
    Cp_pad = _round_up(Cp, 128)         # lane-dense contraction dim for q @ k^T

    compute_bytes = jnp.dtype(compute_dtype).itemsize
    attn_bytes = jnp.dtype(attn_dtype).itemsize

    # ---- hoisted 1x1-conv projections (plain XLA matmuls, f32 then cast) ----
    x_bnc = jnp.transpose(x_nchw, (0, 2, 3, 1)).reshape(B, N, C).astype(jnp.float32)
    q = jnp.einsum("bnc,oc->bno", x_bnc, params["wq"]) + params["bq"]   # (B, N, Cp)
    k = jnp.einsum("bnc,oc->bno", x_bnc, params["wk"]) + params["bk"]   # (B, N, Cp)
    v = jnp.einsum("bnc,oc->bno", x_bnc, params["wv"]) + params["bv"]   # (B, N, C)
    # zero-pad the tiny q/k channel dim to lane width (transparent to the dot)
    q = jnp.pad(q, ((0, 0), (0, 0), (0, Cp_pad - Cp))).astype(compute_dtype)
    k = jnp.pad(k, ((0, 0), (0, 0), (0, Cp_pad - Cp))).astype(compute_dtype)
    v = v.astype(compute_dtype)
    gamma = params["gamma"].reshape(1, 1).astype(jnp.float32)

    # ---- VMEM-aware query-tile selection ----
    vmem_cap = _tpu_vmem_capacity_bytes()
    if vmem_budget_bytes is None:
        vmem_budget_bytes = int(vmem_cap * 0.7)

    if tq is None:
        divisors = [c for c in (512, 256, 128, 64, 32, 16, 8)
                    if c <= N and N % c == 0]
        fitting = [c for c in divisors
                   if _vmem_footprint_bytes(c, N, C, Cp_pad, compute_bytes,
                                            attn_bytes) <= vmem_budget_bytes]
        if fitting:
            tq = fitting[0]             # largest fitting candidate
        elif divisors:
            tq = divisors[-1]           # smallest clean divisor; stretch the limit
        else:
            tq = N                      # no clean divisor: single full tile (legal)
    assert N % tq == 0, f"N={N} must be divisible by query tile tq={tq}"
    assert tq % 8 == 0 or tq == N, f"tq={tq} must be a multiple of 8 (or == N)"
    n_qt = N // tq

    footprint = _vmem_footprint_bytes(tq, N, C, Cp_pad, compute_bytes, attn_bytes)
    vmem_limit = int(min(max(2 * footprint + (4 << 20), 16 << 20),
                         int(vmem_cap * 0.9)))

    flops = 2 * B * N * N * (Cp_pad + C)
    bytes_accessed = (4 * B * N * C                              # x in
                      + compute_bytes * B * N * (2 * Cp_pad + C)  # q, k, v in
                      + 4 * B * N * C                            # out
                      + attn_bytes * B * N * N)                  # attention map
    cost = pl.CostEstimate(flops=flops, transcendentals=B * N * N,
                           bytes_accessed=bytes_accessed)

    out_bnc, attn = pl.pallas_call(
        _self_attn_kernel,
        out_shape=(
            jax.ShapeDtypeStruct((B, N, C), jnp.float32),
            jax.ShapeDtypeStruct((B, N, N), attn_dtype),
        ),
        grid_spec=pltpu.PrefetchScalarGridSpec(
            num_scalar_prefetch=0,
            grid=(B, n_qt),
            in_specs=[
                # residual rows for this query tile
                pl.BlockSpec((None, tq, C), lambda b, qi: (b, qi, 0)),
                # projected queries for this tile
                pl.BlockSpec((None, tq, Cp_pad), lambda b, qi: (b, qi, 0)),
                # full K / V: constant in the query axis -> stay resident in VMEM
                pl.BlockSpec((None, N, Cp_pad), lambda b, qi: (b, 0, 0)),
                pl.BlockSpec((None, N, C), lambda b, qi: (b, 0, 0)),
                pl.BlockSpec(memory_space=pltpu.SMEM),           # gamma scalar
            ],
            out_specs=[
                pl.BlockSpec((None, tq, C), lambda b, qi: (b, qi, 0)),
                pl.BlockSpec((None, tq, N), lambda b, qi: (b, qi, 0)),
            ],
        ),
        compiler_params=pltpu.CompilerParams(
            # No cross-step carries anymore -> both axes are parallel
            # (lets v7x megacore split the query axis even when B == 1).
            dimension_semantics=("parallel", "parallel"),
            vmem_limit_bytes=vmem_limit),
        cost_estimate=cost,
    )(x_bnc, q, k, v, gamma)

    # (B, N, C) -> (B, C, W, H)
    out_nchw = jnp.transpose(out_bnc.reshape(B, W, H, C), (0, 3, 1, 2))
    return out_nchw, attn


def reference_forward(x_nchw, params):
    """Pure-JAX reference mirroring the PyTorch forward exactly."""
    B, C, W, H = x_nchw.shape
    N = W * H
    x_flat = x_nchw.reshape(B, C, N)                                     # (B, C, N)
    q = jnp.einsum("oc,bcn->bon", params["wq"], x_flat) + params["bq"][None, :, None]
    k = jnp.einsum("oc,bcn->bon", params["wk"], x_flat) + params["bk"][None, :, None]
    v = jnp.einsum("oc,bcn->bon", params["wv"], x_flat) + params["bv"][None, :, None]
    energy = jnp.einsum("bci,bcj->bij", q, k)                            # (B, N, N)
    attention = jax.nn.softmax(energy, axis=-1)
    out = jnp.einsum("bcj,bij->bci", v, attention)                       # (B, C, N)
    out = out.reshape(B, C, W, H)
    out = params["gamma"] * out + x_nchw
    return out, attention


if __name__ == "__main__":
    B, C, W, H = 2, 32, 16, 16          # in_dim = 32 -> query/key dim = 4, N = 256
    Cp = C // 8

    key = jax.random.PRNGKey(0)
    k_x, k_wq, k_bq, k_wk, k_bk, k_wv, k_bv = jax.random.split(key, 7)

    x = jax.random.normal(k_x, (B, C, W, H), dtype=jnp.float32)

    params = {
        "wq": 0.1 * jax.random.normal(k_wq, (Cp, C), dtype=jnp.float32),
        "bq": 0.1 * jax.random.normal(k_bq, (Cp,), dtype=jnp.float32),
        "wk": 0.1 * jax.random.normal(k_wk, (Cp, C), dtype=jnp.float32),
        "bk": 0.1 * jax.random.normal(k_bk, (Cp,), dtype=jnp.float32),
        "wv": 0.1 * jax.random.normal(k_wv, (C, C), dtype=jnp.float32),
        "bv": 0.1 * jax.random.normal(k_bv, (C,), dtype=jnp.float32),
        # The module initializes gamma to 0; use a nonzero value here so the
        # test actually exercises the attention branch of `gamma * out + x`.
        "gamma": jnp.full((1,), 0.5, dtype=jnp.float32),
    }

    out_ref, attn_ref = reference_forward(x, params)

    # 1) Default fast path: bf16 MXU operands + bf16 attention-map writeback,
    #    auto-sized query tile.  Checked at bf16-appropriate tolerance.
    out, attn = self_attn_forward(x, params)
    out = jax.block_until_ready(out)
    attn = jax.block_until_ready(attn)
    assert out.shape == (B, C, W, H) and attn.shape == (B, W * H, W * H)
    assert jnp.allclose(out, out_ref, atol=5e-2, rtol=5e-2)
    assert jnp.allclose(attn.astype(jnp.float32), attn_ref, atol=3e-2, rtol=3e-2)

    # 2) Exact f32 mode with an explicit small query tile: exercises the
    #    multi-tile pipeline with resident K/V, tight tolerance vs reference.
    out32, attn32 = self_attn_forward(x, params, tq=64,
                                      compute_dtype=jnp.float32,
                                      attn_dtype=jnp.float32)
    out32 = jax.block_until_ready(out32)
    attn32 = jax.block_until_ready(attn32)
    assert jnp.allclose(out32, out_ref, atol=1e-5, rtol=1e-5)
    assert jnp.allclose(attn32, attn_ref, atol=1e-5, rtol=1e-5)

    # 3) gamma = 0 (module init) case: out must equal x exactly.
    params0 = dict(params, gamma=jnp.zeros((1,), dtype=jnp.float32))
    out0, attn0 = self_attn_forward(x, params0, tq=64,
                                    compute_dtype=jnp.float32,
                                    attn_dtype=jnp.float32)
    out0 = jax.block_until_ready(out0)
    assert jnp.allclose(out0, x, atol=1e-6, rtol=1e-6)
    assert jnp.allclose(attn0, attn_ref, atol=1e-5, rtol=1e-5)

    print("KERNEL_OK")
</pallas_src>

<mosaic_0001>
module attributes {stable_mosaic.version = 11 : i64} {
  func.func @_self_attn_kernel(%arg0: i32, %arg1: i32, %arg2: memref<1x256x32xf32, #tpu.memory_space<vmem>>, %arg3: memref<1x256x128xbf16, #tpu.memory_space<vmem>>, %arg4: memref<1x256x128xbf16, #tpu.memory_space<vmem>>, %arg5: memref<1x256x32xbf16, #tpu.memory_space<vmem>>, %arg6: memref<1x1xf32, #tpu.memory_space<smem>>, %arg7: memref<1x256x32xf32, #tpu.memory_space<vmem>>, %arg8: memref<1x256x256xbf16, #tpu.memory_space<vmem>>) attributes {dimension_semantics = [#tpu.dimension_semantics<parallel>, #tpu.dimension_semantics<parallel>], iteration_bounds = array<i64: 2, 1>, scalar_prefetch = 0 : i64, scratch_operands = 0 : i64, tpu.core_type = #tpu.core_type<tc>, window_params = [{transform_indices = @transform_0, window_bounds = array<i64: 1, 256, 32>}, {transform_indices = @transform_1, window_bounds = array<i64: 1, 256, 128>}, {transform_indices = @transform_2, window_bounds = array<i64: 1, 256, 128>}, {transform_indices = @transform_3, window_bounds = array<i64: 1, 256, 32>}, {transform_indices = @transform_4, window_bounds = array<i64: 1, 1>}, {transform_indices = @transform_5, window_bounds = array<i64: 1, 256, 32>}, {transform_indices = @transform_6, window_bounds = array<i64: 1, 256, 256>}]} {
    %c0 = arith.constant 0 : index
    %c0_0 = arith.constant 0 : index
    %c0_1 = arith.constant 0 : index
    %0 = vector.load %arg3[%c0, %c0_0, %c0_1] : memref<1x256x128xbf16, #tpu.memory_space<vmem>>, vector<1x256x128xbf16>
    %1 = vector.shape_cast %0 : vector<1x256x128xbf16> to vector<256x128xbf16>
    %c0_2 = arith.constant 0 : index
    %c0_3 = arith.constant 0 : index
    %c0_4 = arith.constant 0 : index
    %2 = vector.load %arg4[%c0_2, %c0_3, %c0_4] : memref<1x256x128xbf16, #tpu.memory_space<vmem>>, vector<1x256x128xbf16>
    %3 = vector.shape_cast %2 : vector<1x256x128xbf16> to vector<256x128xbf16>
    %cst = arith.constant dense<0.000000e+00> : vector<256x256xf32>
    %4 = tpu.matmul %1, %3, %cst {dimension_numbers = #tpu.dot_dimension_numbers<[1], [1], [0], [0], [0, 0, 1, 0], [], []>} : vector<256x128xbf16>, vector<256x128xbf16>, vector<256x256xf32> -> vector<256x256xf32>
    %cst_5 = arith.constant dense<0xFF800000> : vector<256xf32>
    %5 = vector.multi_reduction <maximumf>, %4, %cst_5 [1] : vector<256x256xf32> to vector<256xf32>
    %6 = vector.shape_cast %5 : vector<256xf32> to vector<256x1xf32>
    %7 = vector.broadcast %6 : vector<256x1xf32> to vector<256x256xf32>
    %8 = arith.subf %4, %7 : vector<256x256xf32>
    %9 = math.exp %8 : vector<256x256xf32>
    %cst_6 = arith.constant dense<0.000000e+00> : vector<256xf32>
    %10 = vector.multi_reduction <add>, %9, %cst_6 [1] : vector<256x256xf32> to vector<256xf32>
    %11 = vector.shape_cast %10 : vector<256xf32> to vector<256x1xf32>
    %12 = tpu.reciprocal %11 {approx = true} : vector<256x1xf32> -> vector<256x1xf32>
    %13 = arith.mulf %11, %12 : vector<256x1xf32>
    %cst_7 = arith.constant 2.000000e+00 : f32
    %14 = vector.broadcast %cst_7 : f32 to vector<256x1xf32>
    %15 = arith.subf %14, %13 : vector<256x1xf32>
    %16 = arith.mulf %12, %15 : vector<256x1xf32>
    %17 = vector.broadcast %16 : vector<256x1xf32> to vector<256x256xf32>
    %18 = arith.mulf %9, %17 : vector<256x256xf32>
    %19 = arith.truncf %18 : vector<256x256xf32> to vector<256x256xbf16>
    %c0_8 = arith.constant 0 : index
    %c0_9 = arith.constant 0 : index
    %c0_10 = arith.constant 0 : index
    %20 = vector.load %arg5[%c0_8, %c0_9, %c0_10] : memref<1x256x32xbf16, #tpu.memory_space<vmem>>, vector<1x256x32xbf16>
    %21 = vector.shape_cast %20 : vector<1x256x32xbf16> to vector<256x32xbf16>
    %cst_11 = arith.constant dense<0.000000e+00> : vector<256x32xf32>
    %22 = tpu.matmul %19, %21, %cst_11 {dimension_numbers = #tpu.dot_dimension_numbers<[1], [0], [0], [1], [0, 0, 1, 1], [], []>} : vector<256x256xbf16>, vector<256x32xbf16>, vector<256x32xf32> -> vector<256x32xf32>
    %c0_12 = arith.constant 0 : index
    %c0_13 = arith.constant 0 : index
    %23 = memref.load %arg6[%c0_12, %c0_13] : memref<1x1xf32, #tpu.memory_space<smem>>
    %24 = vector.broadcast %23 : f32 to vector<256x32xf32>
    %25 = arith.mulf %24, %22 : vector<256x32xf32>
    %c0_14 = arith.constant 0 : index
    %c0_15 = arith.constant 0 : index
    %c0_16 = arith.constant 0 : index
    %26 = vector.load %arg2[%c0_14, %c0_15, %c0_16] : memref<1x256x32xf32, #tpu.memory_space<vmem>>, vector<1x256x32xf32>
    %27 = vector.shape_cast %26 : vector<1x256x32xf32> to vector<256x32xf32>
    %28 = arith.addf %25, %27 : vector<256x32xf32>
    %c0_17 = arith.constant 0 : index
    %c0_18 = arith.constant 0 : index
    %c0_19 = arith.constant 0 : index
    %29 = vector.load %arg7[%c0_17, %c0_18, %c0_19] : memref<1x256x32xf32, #tpu.memory_space<vmem>>, vector<1x256x32xf32>
    %30 = vector.shape_cast %29 : vector<1x256x32xf32> to vector<256x32xf32>
    %31 = vector.shape_cast %28 : vector<256x32xf32> to vector<1x256x32xf32>
    tpu.vector_store %arg7[%c0_17, %c0_18, %c0_19], %31 {strides = array<i32>} : memref<1x256x32xf32, #tpu.memory_space<vmem>>, vector<1x256x32xf32>,
    %32 = arith.truncf %18 : vector<256x256xf32> to vector<256x256xbf16>
    %c0_20 = arith.constant 0 : index
    %c0_21 = arith.constant 0 : index
    %c0_22 = arith.constant 0 : index
    %33 = vector.load %arg8[%c0_20, %c0_21, %c0_22] : memref<1x256x256xbf16, #tpu.memory_space<vmem>>, vector<1x256x256xbf16>
    %34 = vector.shape_cast %33 : vector<1x256x256xbf16> to vector<256x256xbf16>
    %35 = vector.shape_cast %32 : vector<256x256xbf16> to vector<1x256x256xbf16>
    tpu.vector_store %arg8[%c0_20, %c0_21, %c0_22], %35 {strides = array<i32>} : memref<1x256x256xbf16, #tpu.memory_space<vmem>>, vector<1x256x256xbf16>,
    return
  }
  func.func @transform_0(%arg0: i32, %arg1: i32) -> (i32, i32, i32) {
    %c0_i32 = arith.constant 0 : i32
    %c0_i32_0 = arith.constant 0 : i32
    return %arg0, %arg1, %c0_i32 : i32, i32, i32
  }
  func.func @transform_1(%arg0: i32, %arg1: i32) -> (i32, i32, i32) {
    %c0_i32 = arith.constant 0 : i32
    %c0_i32_0 = arith.constant 0 : i32
    return %arg0, %arg1, %c0_i32 : i32, i32, i32
  }
  func.func @transform_2(%arg0: i32, %arg1: i32) -> (i32, i32, i32) {
    %c0_i32 = arith.constant 0 : i32
    %c0_i32_0 = arith.constant 0 : i32
    %c0_i32_1 = arith.constant 0 : i32
    return %arg0, %c0_i32, %c0_i32_0 : i32, i32, i32
  }
  func.func @transform_3(%arg0: i32, %arg1: i32) -> (i32, i32, i32) {
    %c0_i32 = arith.constant 0 : i32
    %c0_i32_0 = arith.constant 0 : i32
    %c0_i32_1 = arith.constant 0 : i32
    return %arg0, %c0_i32, %c0_i32_0 : i32, i32, i32
  }
  func.func @transform_4(%arg0: i32, %arg1: i32) -> (i32, i32) {
    %c0_i32 = arith.constant 0 : i32
    %c0_i32_0 = arith.constant 0 : i32
    %c0_i32_1 = arith.constant 0 : i32
    return %c0_i32, %c0_i32_0 : i32, i32
  }
  func.func @transform_5(%arg0: i32, %arg1: i32) -> (i32, i32, i32) {
    %c0_i32 = arith.constant 0 : i32
    %c0_i32_0 = arith.constant 0 : i32
    return %arg0, %arg1, %c0_i32 : i32, i32, i32
  }
  func.func @transform_6(%arg0: i32, %arg1: i32) -> (i32, i32, i32) {
    %c0_i32 = arith.constant 0 : i32
    %c0_i32_0 = arith.constant 0 : i32
    return %arg0, %arg1, %c0_i32 : i32, i32, i32
  }
}

</mosaic_0001>

<llo_original>
// kernel: tpu_custom_call.1
$region0: #{tpu_custom_call.1}
  #allocation0 [shape = 'u32[]', space=smem, size = 0x4, offset = 0x4, fixed_abs, tag = 'smem constant byte address 0x4 - core index']
  #allocation1 [shape = 'u32[144,128]{1,0:T(1,128)}', space=vmem, size = 0x12000, scoped, tag = 'internal scratch']
  #allocation2 [shape = 'f32[1,1]{1,0:T(1,128)S(6)}', space=smem, size = 0x200, scoped, tag = 'scoped memory for tpu_custom_call.1']
  %s0 = inlined_call_operand.vmem [shape: f32[2,256,32], index: 0, kind: input, shape index: {}]
  %s1 = inlined_call_operand.vmem [shape: bf16[2,256,128], index: 1, kind: input, shape index: {}]
  %s2 = inlined_call_operand.vmem [shape: bf16[2,256,128], index: 2, kind: input, shape index: {}]
  %s3 = inlined_call_operand.vmem [shape: bf16[2,256,32], index: 3, kind: input, shape index: {}]
  %s4 = inlined_call_operand.<no memory space> [shape: f32[1,1], index: 4, kind: input, shape index: {}]
  %s5 = inlined_call_operand.vmem [shape: f32[2,256,32], index: 5, kind: output, shape index: {0}]
  %s6 = inlined_call_operand.hbm [shape: bf16[2,256,256], index: 6, kind: output, shape index: {1}]
  %7 = xla_tuple %s5, %s6
  %s8 = sld [smem:[#allocation0]]
  $region61: #{tpu_custom_call.1} parent=0
    _
  %s10 = ssub.s32 1, %s8
  %s11 = scalar_select 0, %s10, %s8
  %12 = sst [smem:[#allocation2]] %s4
  $region1: #{tpu_custom_call.1} parent=0
    #allocation3 [shape = 'u8[262144]{0}', space=vmem, size = 0x40000, scoped, tag = 'output window, operand 1']
    #allocation4 [shape = 's32[2]{0}', space=sflag, size = 0x8, scoped, tag = 'scoped memory for tpu_custom_call.1']
    %13 = vsyncpa [#allocation4], 0
    %s14 = scalar_lea.sflag [#allocation4], 1
    %15 = vsyncpa %s14, 0
    loop: start=0, step=1, limit=4
    $region2: #{tpu_custom_call.1} parent=1 // loop_pre_header
      _
    $region3: #{tpu_custom_call.1} parent=1 // loop_header
      %s17 = sphi 0, %s21
      %p18 = scmp.ge.s32.totalorder %s17, 4
      %s24 = sphi 0, %s36
      %s25 = sphi 0, %s32
      %s26 = sphi 0, %s24
      %s27 = sphi 0, %s25
      %s28 = sphi 0, %s26
      %s29 = sphi 0, %s27
      %s41 = sphi 0, %s43
      %s44 = sphi 0, %s41
      %s45 = sphi 0, %s44
      %s61 = sphi 0, %s45
      %s69 = sphi 0, %s71
      %s72 = sphi 0, %s69
      %s73 = sphi 0, %s72
      %s89 = sphi 0, %s73
      %s95 = sphi 0, %s97
      %s98 = sphi 0, %s95
      %s99 = sphi 0, %s98
      %s115 = sphi 0, %s99
      %s121 = sphi 0, %s123
      %s124 = sphi 0, %s121
      %s125 = sphi 0, %s124
      %s141 = sphi 0, %s125
      %s145 = sphi 0, %s145
      %s147 = sphi 0, %s145
      %s148 = sphi 0, %s147
      %s162 = sphi 0, %s148
      %s170 = sphi 0, %s172
      %s173 = sphi 0, %s170
      %s174 = sphi 0, %s173
      %s190 = sphi 0, %s174
      %s198 = sphi 0, %s200
      %s201 = sphi 0, %s198
      %s202 = sphi 0, %s201
      %s218 = sphi 0, %s202
    $region4: #{tpu_custom_call.1} parent=1 // loop_header_branch
      %20 = sbr.rel (%p18) target = $region8
    $region5: #{tpu_custom_call.1} parent=1 // loop_body
      %s22 = ssub.s32 %s17, 1
      %s23 = ssub.s32 %s17, 2
      %s30 = sadd.s32 1, %s25
      %p31 = scmp.ge.s32.totalorder %s30, 1
      %s32 = scalar_select %p31, 0, %s30
      %s33 = sadd.s32 1, %s24
      %s34 = scalar_select %p31, %s33, %s24
      %p35 = scmp.ge.s32.totalorder %s34, 2
      %s36 = scalar_select %p35, 0, %s34
      %s37 = ssub.s32 %s24, %s36
      %s38 = ssub.s32 %s25, %s32
      %s39 = sor.u32 %s37, %s38
      %p40 = scmp.eq.s32.totalorder %s39, 0
      %s42 = sadd.s32 %s41, 1
      %s43 = scalar_select %p40, %s41, %s42
      %p46 = pneg %p40
      %p47 = scmp.eq.s32.totalorder %s17, 1
      %p48 = por %p46, %p47
      %p49 = scmp.ne.s32.totalorder %s41, %s44
      %p50 = scmp.eq.s32.totalorder %s17, 0
      %p51 = por %p49, %p50
      %p52 = scmp.ne.s32.totalorder %s41, %s44
      %p53 = scmp.eq.s32.totalorder %s22, 1
      %p54 = por %p52, %p53
      %p55 = scmp.ne.s32.totalorder %s44, %s45
      %p56 = scmp.eq.s32.totalorder %s22, 0
      %p57 = por %p55, %p56
      %p58 = scmp.ne.s32.totalorder %s44, %s45
      %p59 = scmp.eq.s32.totalorder %s23, 1
      %p60 = por %p58, %p59
      %p62 = scmp.ne.s32.totalorder %s45, %s61
      %p63 = scmp.eq.s32.totalorder %s23, 0
      %p64 = por %p62, %p63
      %s65 = ssub.s32 %s24, %s36
      %s66 = ssub.s32 %s25, %s32
      %s67 = sor.u32 %s65, %s66
      %p68 = scmp.eq.s32.totalorder %s67, 0
      %s70 = sadd.s32 %s69, 1
      %s71 = scalar_select %p68, %s69, %s70
      %p74 = pneg %p68
      %p75 = scmp.eq.s32.totalorder %s17, 1
      %p76 = por %p74, %p75
      %p77 = scmp.ne.s32.totalorder %s69, %s72
      %p78 = scmp.eq.s32.totalorder %s17, 0
      %p79 = por %p77, %p78
      %p80 = scmp.ne.s32.totalorder %s69, %s72
      %p81 = scmp.eq.s32.totalorder %s22, 1
      %p82 = por %p80, %p81
      %p83 = scmp.ne.s32.totalorder %s72, %s73
      %p84 = scmp.eq.s32.totalorder %s22, 0
      %p85 = por %p83, %p84
      %p86 = scmp.ne.s32.totalorder %s72, %s73
      %p87 = scmp.eq.s32.totalorder %s23, 1
      %p88 = por %p86, %p87
      %p90 = scmp.ne.s32.totalorder %s73, %s89
      %p91 = scmp.eq.s32.totalorder %s23, 0
      %p92 = por %p90, %p91
      %s93 = ssub.s32 %s24, %s36
      %p94 = scmp.eq.s32.totalorder %s93, 0
      %s96 = sadd.s32 %s95, 1
      %s97 = scalar_select %p94, %s95, %s96
      %p100 = pneg %p94
      %p101 = scmp.eq.s32.totalorder %s17, 1
      %p102 = por %p100, %p101
      %p103 = scmp.ne.s32.totalorder %s95, %s98
      %p104 = scmp.eq.s32.totalorder %s17, 0
      %p105 = por %p103, %p104
      %p106 = scmp.ne.s32.totalorder %s95, %s98
      %p107 = scmp.eq.s32.totalorder %s22, 1
      %p108 = por %p106, %p107
      %p109 = scmp.ne.s32.totalorder %s98, %s99
      %p110 = scmp.eq.s32.totalorder %s22, 0
      %p111 = por %p109, %p110
      %p112 = scmp.ne.s32.totalorder %s98, %s99
      %p113 = scmp.eq.s32.totalorder %s23, 1
      %p114 = por %p112, %p113
      %p116 = scmp.ne.s32.totalorder %s99, %s115
      %p117 = scmp.eq.s32.totalorder %s23, 0
      %p118 = por %p116, %p117
      %s119 = ssub.s32 %s24, %s36
      %p120 = scmp.eq.s32.totalorder %s119, 0
      %s122 = sadd.s32 %s121, 1
      %s123 = scalar_select %p120, %s121, %s122
      %p126 = pneg %p120
      %p127 = scmp.eq.s32.totalorder %s17, 1
      %p128 = por %p126, %p127
      %p129 = scmp.ne.s32.totalorder %s121, %s124
      %p130 = scmp.eq.s32.totalorder %s17, 0
      %p131 = por %p129, %p130
      %p132 = scmp.ne.s32.totalorder %s121, %s124
      %p133 = scmp.eq.s32.totalorder %s22, 1
      %p134 = por %p132, %p133
      %p135 = scmp.ne.s32.totalorder %s124, %s125
      %p136 = scmp.eq.s32.totalorder %s22, 0
      %p137 = por %p135, %p136
      %p138 = scmp.ne.s32.totalorder %s124, %s125
      %p139 = scmp.eq.s32.totalorder %s23, 1
      %p140 = por %p138, %p139
      %p142 = scmp.ne.s32.totalorder %s125, %s141
      %p143 = scmp.eq.s32.totalorder %s23, 0
      %p144 = por %p142, %p143
      %s146 = sadd.s32 %s145, 1
      %p149 = scmp.eq.s32.totalorder %s17, 1
      %p150 = scmp.ne.s32.totalorder %s145, %s147
      %p151 = scmp.eq.s32.totalorder %s17, 0
      %p152 = por %p150, %p151
      %p153 = scmp.ne.s32.totalorder %s145, %s147
      %p154 = scmp.eq.s32.totalorder %s22, 1
      %p155 = por %p153, %p154
      %p156 = scmp.ne.s32.totalorder %s147, %s148
      %p157 = scmp.eq.s32.totalorder %s22, 0
      %p158 = por %p156, %p157
      %p159 = scmp.ne.s32.totalorder %s147, %s148
      %p160 = scmp.eq.s32.totalorder %s23, 1
      %p161 = por %p159, %p160
      %p163 = scmp.ne.s32.totalorder %s148, %s162
      %p164 = scmp.eq.s32.totalorder %s23, 0
      %p165 = por %p163, %p164
      %s166 = ssub.s32 %s24, %s36
      %s167 = ssub.s32 %s25, %s32
      %s168 = sor.u32 %s166, %s167
      %p169 = scmp.eq.s32.totalorder %s168, 0
      %s171 = sadd.s32 %s170, 1
      %s172 = scalar_select %p169, %s170, %s171
      %p175 = pneg %p169
      %p176 = scmp.eq.s32.totalorder %s17, 1
      %p177 = por %p175, %p176
      %p178 = scmp.ne.s32.totalorder %s170, %s173
      %p179 = scmp.eq.s32.totalorder %s17, 0
      %p180 = por %p178, %p179
      %p181 = scmp.ne.s32.totalorder %s170, %s173
      %p182 = scmp.eq.s32.totalorder %s22, 1
      %p183 = por %p181, %p182
      %p184 = scmp.ne.s32.totalorder %s173, %s174
      %p185 = scmp.eq.s32.totalorder %s22, 0
      %p186 = por %p184, %p185
      %p187 = scmp.ne.s32.totalorder %s173, %s174
      %p188 = scmp.eq.s32.totalorder %s23, 1
      %p189 = por %p187, %p188
      %p191 = scmp.ne.s32.totalorder %s174, %s190
      %p192 = scmp.eq.s32.totalorder %s23, 0
      %p193 = por %p191, %p192
      %s194 = ssub.s32 %s24, %s36
      %s195 = ssub.s32 %s25, %s32
      %s196 = sor.u32 %s194, %s195
      %p197 = scmp.eq.s32.totalorder %s196, 0
      %s199 = sadd.s32 %s198, 1
      %s200 = scalar_select %p197, %s198, %s199
      %p203 = pneg %p197
      %p204 = scmp.eq.s32.totalorder %s17, 1
      %p205 = por %p203, %p204
      %p206 = scmp.ne.s32.totalorder %s198, %s201
      %p207 = scmp.eq.s32.totalorder %s17, 0
      %p208 = por %p206, %p207
      %p209 = scmp.ne.s32.totalorder %s198, %s201
      %p210 = scmp.eq.s32.totalorder %s22, 1
      %p211 = por %p209, %p210
      %p212 = scmp.ne.s32.totalorder %s201, %s202
      %p213 = scmp.eq.s32.totalorder %s22, 0
      %p214 = por %p212, %p213
      %p215 = scmp.ne.s32.totalorder %s201, %s202
      %p216 = scmp.eq.s32.totalorder %s23, 1
      %p217 = por %p215, %p216
      %p219 = scmp.ne.s32.totalorder %s202, %s218
      %p220 = scmp.eq.s32.totalorder %s23, 0
      %p221 = por %p219, %p220
      %p222 = scmp.le.s32.totalorder 1, %s17
      %p223 = scmp.lt.s32.totalorder %s17, 3
      %p224 = pnand %p222, %p223
      %p225 = pneg %p224
      // Predicated region
      $region9: #{tpu_custom_call.1} parent=5 // pred_check
        _
      $region10: #{tpu_custom_call.1} parent=5 // pred_check_branch
        %227 = sbr.rel (%p224) target = $region12
      $region11: #{tpu_custom_call.1} parent=5 // pred_region
        %s228 = ssub.s32 %s17, 1
        // Predicated region
        $region13: #{tpu_custom_call.1} parent=11 // pred_check
          %p229 = pneg %p158
        $region14: #{tpu_custom_call.1} parent=11 // pred_check_branch
          %231 = sbr.rel (%p229) target = $region16
        $region15: #{tpu_custom_call.1} parent=11 // pred_region
          _
        $region16: #{tpu_custom_call.1} parent=11 // pred_fallthru
          _
      $region12: #{tpu_custom_call.1} parent=5 // pred_fallthru
        _
      %p232 = scmp.lt.s32.totalorder %s17, 2
      // Predicated region
      $region17: #{tpu_custom_call.1} parent=5 // pred_check
        %p233 = pneg %p232
      $region18: #{tpu_custom_call.1} parent=5 // pred_check_branch
        %235 = sbr.rel (%p233) target = $region20
      $region19: #{tpu_custom_call.1} parent=5 // pred_region
        // Predicated region
        $region21: #{tpu_custom_call.1} parent=19 // pred_check
          %p236 = pneg %p51
        $region22: #{tpu_custom_call.1} parent=19 // pred_check_branch
          %238 = sbr.rel (%p236) target = $region24
        $region23: #{tpu_custom_call.1} parent=19 // pred_region
          %s239 = smul.u32 32, %s25
          %p240 = scmp.lt.s32.totalorder %s24, 1
          %s241 = scalar_select %p240, %s24, 1
          %p242 = scmp.lt.s32.totalorder %s239, 31
          %s243 = scalar_select %p242, %s239, 31
          %s244 = smul.addr %s241, 32
          %s245 = sadd.s32 %s243, %s244
          %s246 = smul.addr %s245, 8
          %s247 = scalar_lea.vmem %s0, %s246
          %s248 = smul.u32 32, %s25
        $region24: #{tpu_custom_call.1} parent=19 // pred_fallthru
          _
        // Predicated region
        $region25: #{tpu_custom_call.1} parent=19 // pred_check
          %p249 = pneg %p79
        $region26: #{tpu_custom_call.1} parent=19 // pred_check_branch
          %251 = sbr.rel (%p249) target = $region28
        $region27: #{tpu_custom_call.1} parent=19 // pred_region
          %s252 = smul.u32 32, %s25
          %p253 = scmp.lt.s32.totalorder %s24, 1
          %s254 = scalar_select %p253, %s24, 1
          %p255 = scmp.lt.s32.totalorder %s252, 31
          %s256 = scalar_select %p255, %s252, 31
          %s257 = smul.addr %s254, 32
          %s258 = sadd.s32 %s256, %s257
          %s259 = smul.addr %s258, 4
          %s260 = scalar_lea.vmem %s1, %s259
          %s261 = smul.u32 32, %s25
        $region28: #{tpu_custom_call.1} parent=19 // pred_fallthru
          _
        // Predicated region
        $region29: #{tpu_custom_call.1} parent=19 // pred_check
          %p262 = pneg %p105
        $region30: #{tpu_custom_call.1} parent=19 // pred_check_branch
          %264 = sbr.rel (%p262) target = $region32
        $region31: #{tpu_custom_call.1} parent=19 // pred_region
          %p265 = scmp.lt.s32.totalorder %s24, 1
          %s266 = scalar_select %p265, %s24, 1
          %s267 = smul.addr %s266, 32
          %s268 = smul.addr %s267, 4
          %s269 = scalar_lea.vmem %s2, %s268
        $region32: #{tpu_custom_call.1} parent=19 // pred_fallthru
          _
        // Predicated region
        $region33: #{tpu_custom_call.1} parent=19 // pred_check
          %p270 = pneg %p131
        $region34: #{tpu_custom_call.1} parent=19 // pred_check_branch
          %272 = sbr.rel (%p270) target = $region36
        $region35: #{tpu_custom_call.1} parent=19 // pred_region
          %p273 = scmp.lt.s32.totalorder %s24, 1
          %s274 = scalar_select %p273, %s24, 1
          %s275 = smul.addr %s274, 32
          %s276 = smul.addr %s275, 4
          %s277 = scalar_lea.vmem %s3, %s276
        $region36: #{tpu_custom_call.1} parent=19 // pred_fallthru
          _
      $region20: #{tpu_custom_call.1} parent=5 // pred_fallthru
        _
      %p278 = scmp.le.s32.totalorder 1, %s17
      %p279 = scmp.lt.s32.totalorder %s17, 3
      %p280 = pnand %p278, %p279
      %p281 = pneg %p280
      // Predicated region
      $region37: #{tpu_custom_call.1} parent=5 // pred_check
        _
      $region38: #{tpu_custom_call.1} parent=5 // pred_check_branch
        %283 = sbr.rel (%p280) target = $region40
      $region39: #{tpu_custom_call.1} parent=5 // pred_region
        %s284 = ssub.s32 %s17, 1
        %s285 = smul.u32 32, %s27
        %p286 = scmp.lt.s32.totalorder %s26, 1
        %s287 = scalar_select %p286, %s26, 1
        %p288 = scmp.lt.s32.totalorder %s285, 31
        %s289 = scalar_select %p288, %s285, 31
        %s290 = smul.addr %s287, 32
        %s291 = sadd.s32 %s289, %s290
        %s292 = smul.addr %s291, 8
        %s293 = scalar_lea.vmem %s0, %s292
        %p294 = pneg %p57
        %p295 = pneg %p54
        %s296 = smul.u32 32, %s27
        %p297 = scmp.lt.s32.totalorder %s26, 1
        %s298 = scalar_select %p297, %s26, 1
        %p299 = scmp.lt.s32.totalorder %s296, 31
        %s300 = scalar_select %p299, %s296, 31
        %s301 = smul.addr %s298, 32
        %s302 = sadd.s32 %s300, %s301
        %s303 = smul.addr %s302, 4
        %s304 = scalar_lea.vmem %s1, %s303
        %p305 = pneg %p85
        %p306 = pneg %p82
        %p307 = scmp.lt.s32.totalorder %s26, 1
        %s308 = scalar_select %p307, %s26, 1
        %s309 = smul.addr %s308, 32
        %s310 = smul.addr %s309, 4
        %s311 = scalar_lea.vmem %s2, %s310
        %p312 = pneg %p111
        %p313 = pneg %p108
        %p314 = scmp.lt.s32.totalorder %s26, 1
        %s315 = scalar_select %p314, %s26, 1
        %s316 = smul.addr %s315, 32
        %s317 = smul.addr %s316, 4
        %s318 = scalar_lea.vmem %s3, %s317
        %p319 = pneg %p137
        %p320 = pneg %p134
        %p321 = pneg %p158
        %p322 = pneg %p155
        %p323 = pneg %p186
        %p324 = pneg %p183
        %s325 = smul.u32 32, %s27
        %p326 = scmp.lt.s32.totalorder %s26, 1
        %s327 = scalar_select %p326, %s26, 1
        %p328 = scmp.lt.s32.totalorder %s325, 31
        %s329 = scalar_select %p328, %s325, 31
        %s330 = smul.addr %s327, 32
        %s331 = sadd.s32 %s329, %s330
        %s332 = smul.addr %s331, 8
        %s333 = scalar_lea.vmem %s5, %s332
        %p334 = pneg %p214
        %p335 = pneg %p211
        %s336 = sand.u32 %s201, 1
        %s337 = scalar_lea.sflag [#allocation4], %s336
        %s338 = sand.u32 %s201, 1
        %s339 = smul.addr %s338, 256
        %s340 = scalar_lea.vmem [#allocation3], %s339
        %s341 = smul.u32 32, %s27
        %p342 = scmp.lt.s32.totalorder %s26, 1
        %s343 = scalar_select %p342, %s26, 1
        %p344 = scmp.lt.s32.totalorder %s341, 31
        %s345 = scalar_select %p344, %s341, 31
        %s346 = smul.addr %s343, 32
        %s347 = sadd.s32 %s345, %s346
        %s348 = smul.addr %s347, 8
        %s349 = scalar_lea.vmem %s0, %s348
        %s350 = smul.u32 32, %s27
        %s351 = smul.u32 32, %s27
        %p352 = scmp.lt.s32.totalorder %s26, 1
        %s353 = scalar_select %p352, %s26, 1
        %p354 = scmp.lt.s32.totalorder %s351, 31
        %s355 = scalar_select %p354, %s351, 31
        %s356 = smul.addr %s353, 32
        %s357 = sadd.s32 %s355, %s356
        %s358 = smul.addr %s357, 4
        %s359 = scalar_lea.vmem %s1, %s358
        %s360 = smul.u32 32, %s27
        %p361 = scmp.lt.s32.totalorder %s26, 1
        %s362 = scalar_select %p361, %s26, 1
        %s363 = smul.addr %s362, 32
        %s364 = smul.addr %s363, 4
        %s365 = scalar_lea.vmem %s2, %s364
        %p366 = scmp.lt.s32.totalorder %s26, 1
        %s367 = scalar_select %p366, %s26, 1
        %s368 = smul.addr %s367, 32
        %s369 = smul.addr %s368, 4
        %s370 = scalar_lea.vmem %s3, %s369
        %s371 = smul.u32 32, %s27
        %p372 = scmp.lt.s32.totalorder %s26, 1
        %s373 = scalar_select %p372, %s26, 1
        %p374 = scmp.lt.s32.totalorder %s371, 31
        %s375 = scalar_select %p374, %s371, 31
        %s376 = smul.addr %s373, 32
        %s377 = sadd.s32 %s375, %s376
        %s378 = smul.addr %s377, 8
        %s379 = scalar_lea.vmem %s5, %s378
        %s380 = smul.u32 32, %s27
        %s381 = smul.u32 32, %s27
        %v383 = vld [vmem:[%s359] sm:$0xf]
        %v384 = vld [vmem:[%s359 + $0x4] sm:$0xf]
        %v385 = vld [vmem:[%s359 + $0x8] sm:$0xf]
        %v386 = vld [vmem:[%s359 + $0xc] sm:$0xf]
        %v387 = vld [vmem:[%s359 + $0x10] sm:$0xf]
        %v388 = vld [vmem:[%s359 + $0x14] sm:$0xf]
        %v389 = vld [vmem:[%s359 + $0x18] sm:$0xf]
        %v390 = vld [vmem:[%s359 + $0x1c] sm:$0xf]
        %v391 = vld [vmem:[%s359 + $0x20] sm:$0xf]
        %v392 = vld [vmem:[%s359 + $0x24] sm:$0xf]
        %v393 = vld [vmem:[%s359 + $0x28] sm:$0xf]
        %v394 = vld [vmem:[%s359 + $0x2c] sm:$0xf]
        %v395 = vld [vmem:[%s359 + $0x30] sm:$0xf]
        %v396 = vld [vmem:[%s359 + $0x34] sm:$0xf]
        %v397 = vld [vmem:[%s359 + $0x38] sm:$0xf]
        %v398 = vld [vmem:[%s359 + $0x3c] sm:$0xf]
        %v399 = vld [vmem:[%s359 + $0x40] sm:$0xf]
        %v400 = vld [vmem:[%s359 + $0x44] sm:$0xf]
        %v401 = vld [vmem:[%s359 + $0x48] sm:$0xf]
        %v402 = vld [vmem:[%s359 + $0x4c] sm:$0xf]
        %v403 = vld [vmem:[%s359 + $0x50] sm:$0xf]
        %v404 = vld [vmem:[%s359 + $0x54] sm:$0xf]
        %v405 = vld [vmem:[%s359 + $0x58] sm:$0xf]
        %v406 = vld [vmem:[%s359 + $0x5c] sm:$0xf]
        %v407 = vld [vmem:[%s359 + $0x60] sm:$0xf]
        %v408 = vld [vmem:[%s359 + $0x64] sm:$0xf]
        %v409 = vld [vmem:[%s359 + $0x68] sm:$0xf]
        %v410 = vld [vmem:[%s359 + $0x6c] sm:$0xf]
        %v411 = vld [vmem:[%s359 + $0x70] sm:$0xf]
        %v412 = vld [vmem:[%s359 + $0x74] sm:$0xf]
        %v413 = vld [vmem:[%s359 + $0x78] sm:$0xf]
        %v414 = vld [vmem:[%s359 + $0x7c] sm:$0xf]
        %v415 = vld [vmem:[%s365] sm:$0xf]
        %v416 = vld [vmem:[%s365 + $0x4] sm:$0xf]
        %v417 = vld [vmem:[%s365 + $0x8] sm:$0xf]
        %v418 = vld [vmem:[%s365 + $0xc] sm:$0xf]
        %v419 = vld [vmem:[%s365 + $0x10] sm:$0xf]
        %v420 = vld [vmem:[%s365 + $0x14] sm:$0xf]
        %v421 = vld [vmem:[%s365 + $0x18] sm:$0xf]
        %v422 = vld [vmem:[%s365 + $0x1c] sm:$0xf]
        %v423 = vld [vmem:[%s365 + $0x20] sm:$0xf]
        %v424 = vld [vmem:[%s365 + $0x24] sm:$0xf]
        %v425 = vld [vmem:[%s365 + $0x28] sm:$0xf]
        %v426 = vld [vmem:[%s365 + $0x2c] sm:$0xf]
        %v427 = vld [vmem:[%s365 + $0x30] sm:$0xf]
        %v428 = vld [vmem:[%s365 + $0x34] sm:$0xf]
        %v429 = vld [vmem:[%s365 + $0x38] sm:$0xf]
        %v430 = vld [vmem:[%s365 + $0x3c] sm:$0xf]
        %v431 = vld [vmem:[%s365 + $0x40] sm:$0xf]
        %v432 = vld [vmem:[%s365 + $0x44] sm:$0xf]
        %v433 = vld [vmem:[%s365 + $0x48] sm:$0xf]
        %v434 = vld [vmem:[%s365 + $0x4c] sm:$0xf]
        %v435 = vld [vmem:[%s365 + $0x50] sm:$0xf]
        %v436 = vld [vmem:[%s365 + $0x54] sm:$0xf]
        %v437 = vld [vmem:[%s365 + $0x58] sm:$0xf]
        %v438 = vld [vmem:[%s365 + $0x5c] sm:$0xf]
        %v439 = vld [vmem:[%s365 + $0x60] sm:$0xf]
        %v440 = vld [vmem:[%s365 + $0x64] sm:$0xf]
        %v441 = vld [vmem:[%s365 + $0x68] sm:$0xf]
        %v442 = vld [vmem:[%s365 + $0x6c] sm:$0xf]
        %v443 = vld [vmem:[%s365 + $0x70] sm:$0xf]
        %v444 = vld [vmem:[%s365 + $0x74] sm:$0xf]
        %v445 = vld [vmem:[%s365 + $0x78] sm:$0xf]
        %v446 = vld [vmem:[%s365 + $0x7c] sm:$0xf]
        %v479 = vunpack.c.l.b16 %v383
        %v480 = vunpack.c.l.b16 %v384
        %v481 = vunpack.c.l.b16 %v385
        %v482 = vunpack.c.l.b16 %v386
        %v483 = vunpack.c.l.b16 %v387
        %v484 = vunpack.c.l.b16 %v388
        %v485 = vunpack.c.l.b16 %v389
        %v486 = vunpack.c.l.b16 %v390
        %v487 = vunpack.c.l.b16 %v391
        %v488 = vunpack.c.l.b16 %v392
        %v489 = vunpack.c.l.b16 %v393
        %v490 = vunpack.c.l.b16 %v394
        %v491 = vunpack.c.l.b16 %v395
        %v492 = vunpack.c.l.b16 %v396
        %v493 = vunpack.c.l.b16 %v397
        %v494 = vunpack.c.l.b16 %v398
        %v495 = vunpack.c.l.b16 %v399
        %v496 = vunpack.c.l.b16 %v400
        %v497 = vunpack.c.l.b16 %v401
        %v498 = vunpack.c.l.b16 %v402
        %v499 = vunpack.c.l.b16 %v403
        %v500 = vunpack.c.l.b16 %v404
        %v501 = vunpack.c.l.b16 %v405
        %v502 = vunpack.c.l.b16 %v406
        %v503 = vunpack.c.l.b16 %v407
        %v504 = vunpack.c.l.b16 %v408
        %v505 = vunpack.c.l.b16 %v409
        %v506 = vunpack.c.l.b16 %v410
        %v507 = vunpack.c.l.b16 %v411
        %v508 = vunpack.c.l.b16 %v412
        %v509 = vunpack.c.l.b16 %v413
        %v510 = vunpack.c.l.b16 %v414
        %v511 = vpack.c.b16 %v480, %v479
        %v512 = vpack.c.b16 %v482, %v481
        %v513 = vpack.c.b16 %v484, %v483
        %v514 = vpack.c.b16 %v486, %v485
        %v515 = vpack.c.b16 %v488, %v487
        %v516 = vpack.c.b16 %v490, %v489
        %v517 = vpack.c.b16 %v492, %v491
        %v518 = vpack.c.b16 %v494, %v493
        %v519 = vpack.c.b16 %v496, %v495
        %v520 = vpack.c.b16 %v498, %v497
        %v521 = vpack.c.b16 %v500, %v499
        %v522 = vpack.c.b16 %v502, %v501
        %v523 = vpack.c.b16 %v504, %v503
        %v524 = vpack.c.b16 %v506, %v505
        %v525 = vpack.c.b16 %v508, %v507
        %v526 = vpack.c.b16 %v510, %v509
        %v575 = vunpack.c.l.b16 %v415
        %v576 = vunpack.c.l.b16 %v416
        %v577 = vunpack.c.l.b16 %v417
        %v578 = vunpack.c.l.b16 %v418
        %v579 = vunpack.c.l.b16 %v419
        %v580 = vunpack.c.l.b16 %v420
        %v581 = vunpack.c.l.b16 %v421
        %v582 = vunpack.c.l.b16 %v422
        %v583 = vunpack.c.l.b16 %v423
        %v584 = vunpack.c.l.b16 %v424
        %v585 = vunpack.c.l.b16 %v425
        %v586 = vunpack.c.l.b16 %v426
        %v587 = vunpack.c.l.b16 %v427
        %v588 = vunpack.c.l.b16 %v428
        %v589 = vunpack.c.l.b16 %v429
        %v590 = vunpack.c.l.b16 %v430
        %v591 = vunpack.c.l.b16 %v431
        %v592 = vunpack.c.l.b16 %v432
        %v593 = vunpack.c.l.b16 %v433
        %v594 = vunpack.c.l.b16 %v434
        %v595 = vunpack.c.l.b16 %v435
        %v596 = vunpack.c.l.b16 %v436
        %v597 = vunpack.c.l.b16 %v437
        %v598 = vunpack.c.l.b16 %v438
        %v599 = vunpack.c.l.b16 %v439
        %v600 = vunpack.c.l.b16 %v440
        %v601 = vunpack.c.l.b16 %v441
        %v602 = vunpack.c.l.b16 %v442
        %v603 = vunpack.c.l.b16 %v443
        %v604 = vunpack.c.l.b16 %v444
        %v605 = vunpack.c.l.b16 %v445
        %v606 = vunpack.c.l.b16 %v446
        %v607 = vpack.c.b16 %v576, %v575
        %v608 = vpack.c.b16 %v578, %v577
        %v609 = vpack.c.b16 %v580, %v579
        %v610 = vpack.c.b16 %v582, %v581
        %v611 = vpack.c.b16 %v584, %v583
        %v612 = vpack.c.b16 %v586, %v585
        %v613 = vpack.c.b16 %v588, %v587
        %v614 = vpack.c.b16 %v590, %v589
        %v615 = vpack.c.b16 %v592, %v591
        %v616 = vpack.c.b16 %v594, %v593
        %v617 = vpack.c.b16 %v596, %v595
        %v618 = vpack.c.b16 %v598, %v597
        %v619 = vpack.c.b16 %v600, %v599
        %v620 = vpack.c.b16 %v602, %v601
        %v621 = vpack.c.b16 %v604, %v603
        %v622 = vpack.c.b16 %v606, %v605
        %639 = vmatprep.subr.bf16.mxu0 0
        %640 = vmatpush1.bf16.xpose.msra.mxu0 %v607
        %641 = vmatprep.subr.bf16.mxu0 0
        %642 = vmatpush1.bf16.xpose.msra.mxu0 %v608
        %643 = vmatprep.subr.bf16.mxu0 0
        %644 = vmatpush1.bf16.xpose.msra.mxu0 %v609
        %645 = vmatprep.subr.bf16.mxu0 0
        %646 = vmatpush1.bf16.xpose.msra.mxu0 %v610
        %647 = vmatprep.subr.bf16.mxu0 0
        %648 = vmatpush1.bf16.xpose.msra.mxu0 %v611
        %649 = vmatprep.subr.bf16.mxu0 0
        %650 = vmatpush1.bf16.xpose.msra.mxu0 %v612
        %651 = vmatprep.subr.bf16.mxu0 0
        %652 = vmatpush1.bf16.xpose.msra.mxu0 %v613
        %653 = vmatprep.subr.bf16.mxu0 0
        %654 = vmatpush1.bf16.xpose.msra.mxu0 %v614
        %655 = vmatprep.subr.bf16.mxu0 0
        %656 = vmatpush1.bf16.xpose.msra.mxu0 %v615
        %657 = vmatprep.subr.bf16.mxu0 0
        %658 = vmatpush1.bf16.xpose.msra.mxu0 %v616
        %659 = vmatprep.subr.bf16.mxu0 0
        %660 = vmatpush1.bf16.xpose.msra.mxu0 %v617
        %661 = vmatprep.subr.bf16.mxu0 0
        %662 = vmatpush1.bf16.xpose.msra.mxu0 %v618
        %663 = vmatprep.subr.bf16.mxu0 0
        %664 = vmatpush1.bf16.xpose.msra.mxu0 %v619
        %665 = vmatprep.subr.bf16.mxu0 0
        %666 = vmatpush1.bf16.xpose.msra.mxu0 %v620
        %667 = vmatprep.subr.bf16.mxu0 0
        %668 = vmatpush1.bf16.xpose.msra.mxu0 %v621
        %669 = vmatprep.subr.bf16.mxu0 0
        %670 = vmatpush1.bf16.xpose.msra.mxu0 %v622
        %671 = vmatprep.mubr.bf16.mxu0 0
        %672 = vmatmul.mubr.bf16.gmra.mrb[0].mxu0 %v511
        %v673 = vpop.f32.mrb[0].mxu0
        %v674 = vadd.f32 0.0, %v673
        %v675 = vpop.f32.mrb[0].mxu0
        %v676 = vadd.f32 0.0, %v675
        %v677 = vpop.f32.mrb[0].mxu0
        %v678 = vadd.f32 0.0, %v677
        %v679 = vpop.f32.mrb[0].mxu0
        %v680 = vadd.f32 0.0, %v679
        %681 = vmatprep.mubr.bf16.mxu0 0
        %682 = vmatmul.mubr.bf16.gmra.mrb[0].mxu0 %v512
        %v683 = vpop.f32.mrb[0].mxu0
        %v684 = vadd.f32 0.0, %v683
        %v685 = vpop.f32.mrb[0].mxu0
        %v686 = vadd.f32 0.0, %v685
        %v687 = vpop.f32.mrb[0].mxu0
        %v688 = vadd.f32 0.0, %v687
        %v689 = vpop.f32.mrb[0].mxu0
        %v690 = vadd.f32 0.0, %v689
        %691 = vmatprep.mubr.bf16.mxu0 0
        %692 = vmatmul.mubr.bf16.gmra.mrb[0].mxu0 %v513
        %v693 = vpop.f32.mrb[0].mxu0
        %v694 = vadd.f32 0.0, %v693
        %v695 = vpop.f32.mrb[0].mxu0
        %v696 = vadd.f32 0.0, %v695
        %v697 = vpop.f32.mrb[0].mxu0
        %v698 = vadd.f32 0.0, %v697
        %v699 = vpop.f32.mrb[0].mxu0
        %v700 = vadd.f32 0.0, %v699
        %701 = vmatprep.mubr.bf16.mxu0 0
        %702 = vmatmul.mubr.bf16.gmra.mrb[0].mxu0 %v514
        %v703 = vpop.f32.mrb[0].mxu0
        %v704 = vadd.f32 0.0, %v703
        %v705 = vpop.f32.mrb[0].mxu0
        %v706 = vadd.f32 0.0, %v705
        %v707 = vpop.f32.mrb[0].mxu0
        %v708 = vadd.f32 0.0, %v707
        %v709 = vpop.f32.mrb[0].mxu0
        %v710 = vadd.f32 0.0, %v709
        %711 = vmatprep.mubr.bf16.mxu0 0
        %712 = vmatmul.mubr.bf16.gmra.mrb[0].mxu0 %v515
        %v713 = vpop.f32.mrb[0].mxu0
        %v714 = vadd.f32 0.0, %v713
        %v715 = vpop.f32.mrb[0].mxu0
        %v716 = vadd.f32 0.0, %v715
        %v717 = vpop.f32.mrb[0].mxu0
        %v718 = vadd.f32 0.0, %v717
        %v719 = vpop.f32.mrb[0].mxu0
        %v720 = vadd.f32 0.0, %v719
        %721 = vmatprep.mubr.bf16.mxu0 0
        %722 = vmatmul.mubr.bf16.gmra.mrb[0].mxu0 %v516
        %v723 = vpop.f32.mrb[0].mxu0
        %v724 = vadd.f32 0.0, %v723
        %v725 = vpop.f32.mrb[0].mxu0
        %v726 = vadd.f32 0.0, %v725
        %v727 = vpop.f32.mrb[0].mxu0
        %v728 = vadd.f32 0.0, %v727
        %v729 = vpop.f32.mrb[0].mxu0
        %v730 = vadd.f32 0.0, %v729
        %731 = vmatprep.mubr.bf16.mxu0 0
        %732 = vmatmul.mubr.bf16.gmra.mrb[0].mxu0 %v517
        %v733 = vpop.f32.mrb[0].mxu0
        %v734 = vadd.f32 0.0, %v733
        %v735 = vpop.f32.mrb[0].mxu0
        %v736 = vadd.f32 0.0, %v735
        %v737 = vpop.f32.mrb[0].mxu0
        %v738 = vadd.f32 0.0, %v737
        %v739 = vpop.f32.mrb[0].mxu0
        %v740 = vadd.f32 0.0, %v739
        %741 = vmatprep.mubr.bf16.mxu0 0
        %742 = vmatmul.mubr.bf16.gmra.mrb[0].mxu0 %v518
        %v743 = vpop.f32.mrb[0].mxu0
        %v744 = vadd.f32 0.0, %v743
        %v745 = vpop.f32.mrb[0].mxu0
        %v746 = vadd.f32 0.0, %v745
        %v747 = vpop.f32.mrb[0].mxu0
        %v748 = vadd.f32 0.0, %v747
        %v749 = vpop.f32.mrb[0].mxu0
        %v750 = vadd.f32 0.0, %v749
        %751 = vmatprep.mubr.bf16.mxu0 0
        %752 = vmatmul.mubr.bf16.gmra.mrb[0].mxu0 %v519
        %v753 = vpop.f32.mrb[0].mxu0
        %v754 = vadd.f32 0.0, %v753
        %v755 = vpop.f32.mrb[0].mxu0
        %v756 = vadd.f32 0.0, %v755
        %v757 = vpop.f32.mrb[0].mxu0
        %v758 = vadd.f32 0.0, %v757
        %v759 = vpop.f32.mrb[0].mxu0
        %v760 = vadd.f32 0.0, %v759
        %761 = vmatprep.mubr.bf16.mxu0 0
        %762 = vmatmul.mubr.bf16.gmra.mrb[0].mxu0 %v520
        %v763 = vpop.f32.mrb[0].mxu0
        %v764 = vadd.f32 0.0, %v763
        %v765 = vpop.f32.mrb[0].mxu0
        %v766 = vadd.f32 0.0, %v765
        %v767 = vpop.f32.mrb[0].mxu0
        %v768 = vadd.f32 0.0, %v767
        %v769 = vpop.f32.mrb[0].mxu0
        %v770 = vadd.f32 0.0, %v769
        %771 = vmatprep.mubr.bf16.mxu0 0
        %772 = vmatmul.mubr.bf16.gmra.mrb[0].mxu0 %v521
        %v773 = vpop.f32.mrb[0].mxu0
        %v774 = vadd.f32 0.0, %v773
        %v775 = vpop.f32.mrb[0].mxu0
        %v776 = vadd.f32 0.0, %v775
        %v777 = vpop.f32.mrb[0].mxu0
        %v778 = vadd.f32 0.0, %v777
        %v779 = vpop.f32.mrb[0].mxu0
        %v780 = vadd.f32 0.0, %v779
        %781 = vmatprep.mubr.bf16.mxu0 0
        %782 = vmatmul.mubr.bf16.gmra.mrb[0].mxu0 %v522
        %v783 = vpop.f32.mrb[0].mxu0
        %v784 = vadd.f32 0.0, %v783
        %v785 = vpop.f32.mrb[0].mxu0
        %v786 = vadd.f32 0.0, %v785
        %v787 = vpop.f32.mrb[0].mxu0
        %v788 = vadd.f32 0.0, %v787
        %v789 = vpop.f32.mrb[0].mxu0
        %v790 = vadd.f32 0.0, %v789
        %791 = vmatprep.mubr.bf16.mxu0 0
        %792 = vmatmul.mubr.bf16.gmra.mrb[0].mxu0 %v523
        %v793 = vpop.f32.mrb[0].mxu0
        %v794 = vadd.f32 0.0, %v793
        %v795 = vpop.f32.mrb[0].mxu0
        %v796 = vadd.f32 0.0, %v795
        %v797 = vpop.f32.mrb[0].mxu0
        %v798 = vadd.f32 0.0, %v797
        %v799 = vpop.f32.mrb[0].mxu0
        %v800 = vadd.f32 0.0, %v799
        %801 = vmatprep.mubr.bf16.mxu0 0
        %802 = vmatmul.mubr.bf16.gmra.mrb[0].mxu0 %v524
        %v803 = vpop.f32.mrb[0].mxu0
        %v804 = vadd.f32 0.0, %v803
        %v805 = vpop.f32.mrb[0].mxu0
        %v806 = vadd.f32 0.0, %v805
        %v807 = vpop.f32.mrb[0].mxu0
        %v808 = vadd.f32 0.0, %v807
        %v809 = vpop.f32.mrb[0].mxu0
        %v810 = vadd.f32 0.0, %v809
        %811 = vmatprep.mubr.bf16.mxu0 0
        %812 = vmatmul.mubr.bf16.gmra.mrb[0].mxu0 %v525
        %v813 = vpop.f32.mrb[0].mxu0
        %v814 = vadd.f32 0.0, %v813
        %v815 = vpop.f32.mrb[0].mxu0
        %v816 = vadd.f32 0.0, %v815
        %v817 = vpop.f32.mrb[0].mxu0
        %v818 = vadd.f32 0.0, %v817
        %v819 = vpop.f32.mrb[0].mxu0
        %v820 = vadd.f32 0.0, %v819
        %821 = vmatprep.mubr.bf16.mxu0 0
        %822 = vmatmul.mubr.bf16.gmra.mrb[0].mxu0 %v526
        %v823 = vpop.f32.mrb[0].mxu0
        %v824 = vadd.f32 0.0, %v823
        %v825 = vpop.f32.mrb[0].mxu0
        %v826 = vadd.f32 0.0, %v825
        %v827 = vpop.f32.mrb[0].mxu0
        %v828 = vadd.f32 0.0, %v827
        %v829 = vpop.f32.mrb[0].mxu0
        %v830 = vadd.f32 0.0, %v829
        %831 = vdwg.mxu0
        %v832 = vmax.f32 %v674, %v676
        %833 = vmax.xlane.f32.xlu0 %v832
        %v834 = vpop.xlane.xlu0 %833
        %v835 = vmax.f32 %v678, %v680
        %836 = vmax.xlane.f32.xlu0 %v835
        %v837 = vpop.xlane.xlu0 %836
        %v838 = vmax.f32 %v684, %v686
        %839 = vmax.xlane.f32.xlu0 %v838
        %v840 = vpop.xlane.xlu0 %839
        %v841 = vmax.f32 %v688, %v690
        %842 = vmax.xlane.f32.xlu0 %v841
        %v843 = vpop.xlane.xlu0 %842
        %v844 = vmax.f32 %v694, %v696
        %845 = vmax.xlane.f32.xlu0 %v844
        %v846 = vpop.xlane.xlu0 %845
        %v847 = vmax.f32 %v698, %v700
        %848 = vmax.xlane.f32.xlu0 %v847
        %v849 = vpop.xlane.xlu0 %848
        %v850 = vmax.f32 %v704, %v706
        %851 = vmax.xlane.f32.xlu0 %v850
        %v852 = vpop.xlane.xlu0 %851
        %v853 = vmax.f32 %v708, %v710
        %854 = vmax.xlane.f32.xlu0 %v853
        %v855 = vpop.xlane.xlu0 %854
        %v856 = vmax.f32 %v714, %v716
        %857 = vmax.xlane.f32.xlu0 %v856
        %v858 = vpop.xlane.xlu0 %857
        %v859 = vmax.f32 %v718, %v720
        %860 = vmax.xlane.f32.xlu0 %v859
        %v861 = vpop.xlane.xlu0 %860
        %v862 = vmax.f32 %v724, %v726
        %863 = vmax.xlane.f32.xlu0 %v862
        %v864 = vpop.xlane.xlu0 %863
        %v865 = vmax.f32 %v728, %v730
        %866 = vmax.xlane.f32.xlu0 %v865
        %v867 = vpop.xlane.xlu0 %866
        %v868 = vmax.f32 %v734, %v736
        %869 = vmax.xlane.f32.xlu0 %v868
        %v870 = vpop.xlane.xlu0 %869
        %v871 = vmax.f32 %v738, %v740
        %872 = vmax.xlane.f32.xlu0 %v871
        %v873 = vpop.xlane.xlu0 %872
        %v874 = vmax.f32 %v744, %v746
        %875 = vmax.xlane.f32.xlu0 %v874
        %v876 = vpop.xlane.xlu0 %875
        %v877 = vmax.f32 %v748, %v750
        %878 = vmax.xlane.f32.xlu0 %v877
        %v879 = vpop.xlane.xlu0 %878
        %v880 = vmax.f32 %v754, %v756
        %881 = vmax.xlane.f32.xlu0 %v880
        %v882 = vpop.xlane.xlu0 %881
        %v883 = vmax.f32 %v758, %v760
        %884 = vmax.xlane.f32.xlu0 %v883
        %v885 = vpop.xlane.xlu0 %884
        %v886 = vmax.f32 %v764, %v766
        %887 = vmax.xlane.f32.xlu0 %v886
        %v888 = vpop.xlane.xlu0 %887
        %v889 = vmax.f32 %v768, %v770
        %890 = vmax.xlane.f32.xlu0 %v889
        %v891 = vpop.xlane.xlu0 %890
        %v892 = vmax.f32 %v774, %v776
        %893 = vmax.xlane.f32.xlu0 %v892
        %v894 = vpop.xlane.xlu0 %893
        %v895 = vmax.f32 %v778, %v780
        %896 = vmax.xlane.f32.xlu0 %v895
        %v897 = vpop.xlane.xlu0 %896
        %v898 = vmax.f32 %v784, %v786
        %899 = vmax.xlane.f32.xlu0 %v898
        %v900 = vpop.xlane.xlu0 %899
        %v901 = vmax.f32 %v788, %v790
        %902 = vmax.xlane.f32.xlu0 %v901
        %v903 = vpop.xlane.xlu0 %902
        %v904 = vmax.f32 %v794, %v796
        %905 = vmax.xlane.f32.xlu0 %v904
        %v906 = vpop.xlane.xlu0 %905
        %v907 = vmax.f32 %v798, %v800
        %908 = vmax.xlane.f32.xlu0 %v907
        %v909 = vpop.xlane.xlu0 %908
        %v910 = vmax.f32 %v804, %v806
        %911 = vmax.xlane.f32.xlu0 %v910
        %v912 = vpop.xlane.xlu0 %911
        %v913 = vmax.f32 %v808, %v810
        %914 = vmax.xlane.f32.xlu0 %v913
        %v915 = vpop.xlane.xlu0 %914
        %v916 = vmax.f32 %v814, %v816
        %917 = vmax.xlane.f32.xlu0 %v916
        %v918 = vpop.xlane.xlu0 %917
        %v919 = vmax.f32 %v818, %v820
        %920 = vmax.xlane.f32.xlu0 %v919
        %v921 = vpop.xlane.xlu0 %920
        %v922 = vmax.f32 %v824, %v826
        %923 = vmax.xlane.f32.xlu0 %v922
        %v924 = vpop.xlane.xlu0 %923
        %v925 = vmax.f32 %v828, %v830
        %926 = vmax.xlane.f32.xlu0 %v925
        %v927 = vpop.xlane.xlu0 %926
        %v928 = vsub.f32 %v674, %v834
        %v929 = vsub.f32 %v676, %v834
        %v930 = vsub.f32 %v678, %v837
        %v931 = vsub.f32 %v680, %v837
        %v932 = vsub.f32 %v684, %v840
        %v933 = vsub.f32 %v686, %v840
        %v934 = vsub.f32 %v688, %v843
        %v935 = vsub.f32 %v690, %v843
        %v936 = vsub.f32 %v694, %v846
        %v937 = vsub.f32 %v696, %v846
        %v938 = vsub.f32 %v698, %v849
        %v939 = vsub.f32 %v700, %v849
        %v940 = vsub.f32 %v704, %v852
        %v941 = vsub.f32 %v706, %v852
        %v942 = vsub.f32 %v708, %v855
        %v943 = vsub.f32 %v710, %v855
        %v944 = vsub.f32 %v714, %v858
        %v945 = vsub.f32 %v716, %v858
        %v946 = vsub.f32 %v718, %v861
        %v947 = vsub.f32 %v720, %v861
        %v948 = vsub.f32 %v724, %v864
        %v949 = vsub.f32 %v726, %v864
        %v950 = vsub.f32 %v728, %v867
        %v951 = vsub.f32 %v730, %v867
        %v952 = vsub.f32 %v734, %v870
        %v953 = vsub.f32 %v736, %v870
        %v954 = vsub.f32 %v738, %v873
        %v955 = vsub.f32 %v740, %v873
        %v956 = vsub.f32 %v744, %v876
        %v957 = vsub.f32 %v746, %v876
        %v958 = vsub.f32 %v748, %v879
        %v959 = vsub.f32 %v750, %v879
        %v960 = vsub.f32 %v754, %v882
        %v961 = vsub.f32 %v756, %v882
        %v962 = vsub.f32 %v758, %v885
        %v963 = vsub.f32 %v760, %v885
        %v964 = vsub.f32 %v764, %v888
        %v965 = vsub.f32 %v766, %v888
        %v966 = vsub.f32 %v768, %v891
        %v967 = vsub.f32 %v770, %v891
        %v968 = vsub.f32 %v774, %v894
        %v969 = vsub.f32 %v776, %v894
        %v970 = vsub.f32 %v778, %v897
        %v971 = vsub.f32 %v780, %v897
        %v972 = vsub.f32 %v784, %v900
        %v973 = vsub.f32 %v786, %v900
        %v974 = vsub.f32 %v788, %v903
        %v975 = vsub.f32 %v790, %v903
        %v976 = vsub.f32 %v794, %v906
        %v977 = vsub.f32 %v796, %v906
        %v978 = vsub.f32 %v798, %v909
        %v979 = vsub.f32 %v800, %v909
        %v980 = vsub.f32 %v804, %v912
        %v981 = vsub.f32 %v806, %v912
        %v982 = vsub.f32 %v808, %v915
        %v983 = vsub.f32 %v810, %v915
        %v984 = vsub.f32 %v814, %v918
        %v985 = vsub.f32 %v816, %v918
        %v986 = vsub.f32 %v818, %v921
        %v987 = vsub.f32 %v820, %v921
        %v988 = vsub.f32 %v824, %v924
        %v989 = vsub.f32 %v826, %v924
        %v990 = vsub.f32 %v828, %v927
        %v991 = vsub.f32 %v830, %v927
        %v992 = vmul.f32 %v928, 1.442695
        %v993 = vpow.pop %v992
        %v994 = vmul.f32 %v929, 1.442695
        %v995 = vpow.pop %v994
        %v996 = vmul.f32 %v930, 1.442695
        %v997 = vpow.pop %v996
        %v998 = vmul.f32 %v931, 1.442695
        %v999 = vpow.pop %v998
        %v1000 = vmul.f32 %v932, 1.442695
        %v1001 = vpow.pop %v1000
        %v1002 = vmul.f32 %v933, 1.442695
        %v1003 = vpow.pop %v1002
        %v1004 = vmul.f32 %v934, 1.442695
        %v1005 = vpow.pop %v1004
        %v1006 = vmul.f32 %v935, 1.442695
        %v1007 = vpow.pop %v1006
        %v1008 = vmul.f32 %v936, 1.442695
        %v1009 = vpow.pop %v1008
        %v1010 = vmul.f32 %v937, 1.442695
        %v1011 = vpow.pop %v1010
        %v1012 = vmul.f32 %v938, 1.442695
        %v1013 = vpow.pop %v1012
        %v1014 = vmul.f32 %v939, 1.442695
        %v1015 = vpow.pop %v1014
        %v1016 = vmul.f32 %v940, 1.442695
        %v1017 = vpow.pop %v1016
        %v1018 = vmul.f32 %v941, 1.442695
        %v1019 = vpow.pop %v1018
        %v1020 = vmul.f32 %v942, 1.442695
        %v1021 = vpow.pop %v1020
        %v1022 = vmul.f32 %v943, 1.442695
        %v1023 = vpow.pop %v1022
        %v1024 = vmul.f32 %v944, 1.442695
        %v1025 = vpow.pop %v1024
        %v1026 = vmul.f32 %v945, 1.442695
        %v1027 = vpow.pop %v1026
        %v1028 = vmul.f32 %v946, 1.442695
        %v1029 = vpow.pop %v1028
        %v1030 = vmul.f32 %v947, 1.442695
        %v1031 = vpow.pop %v1030
        %v1032 = vmul.f32 %v948, 1.442695
        %v1033 = vpow.pop %v1032
        %v1034 = vmul.f32 %v949, 1.442695
        %v1035 = vpow.pop %v1034
        %v1036 = vmul.f32 %v950, 1.442695
        %v1037 = vpow.pop %v1036
        %v1038 = vmul.f32 %v951, 1.442695
        %v1039 = vpow.pop %v1038
        %v1040 = vmul.f32 %v952, 1.442695
        %v1041 = vpow.pop %v1040
        %v1042 = vmul.f32 %v953, 1.442695
        %v1043 = vpow.pop %v1042
        %v1044 = vmul.f32 %v954, 1.442695
        %v1045 = vpow.pop %v1044
        %v1046 = vmul.f32 %v955, 1.442695
        %v1047 = vpow.pop %v1046
        %v1048 = vmul.f32 %v956, 1.442695
        %v1049 = vpow.pop %v1048
        %v1050 = vmul.f32 %v957, 1.442695
        %v1051 = vpow.pop %v1050
        %v1052 = vmul.f32 %v958, 1.442695
        %v1053 = vpow.pop %v1052
        %v1054 = vmul.f32 %v959, 1.442695
        %v1055 = vpow.pop %v1054
        %v1056 = vmul.f32 %v960, 1.442695
        %v1057 = vpow.pop %v1056
        %v1058 = vmul.f32 %v961, 1.442695
        %v1059 = vpow.pop %v1058
        %v1060 = vmul.f32 %v962, 1.442695
        %v1061 = vpow.pop %v1060
        %v1062 = vmul.f32 %v963, 1.442695
        %v1063 = vpow.pop %v1062
        %v1064 = vmul.f32 %v964, 1.442695
        %v1065 = vpow.pop %v1064
        %v1066 = vmul.f32 %v965, 1.442695
        %v1067 = vpow.pop %v1066
        %v1068 = vmul.f32 %v966, 1.442695
        %v1069 = vpow.pop %v1068
        %v1070 = vmul.f32 %v967, 1.442695
        %v1071 = vpow.pop %v1070
        %v1072 = vmul.f32 %v968, 1.442695
        %v1073 = vpow.pop %v1072
        %v1074 = vmul.f32 %v969, 1.442695
        %v1075 = vpow.pop %v1074
        %v1076 = vmul.f32 %v970, 1.442695
        %v1077 = vpow.pop %v1076
        %v1078 = vmul.f32 %v971, 1.442695
        %v1079 = vpow.pop %v1078
        %v1080 = vmul.f32 %v972, 1.442695
        %v1081 = vpow.pop %v1080
        %v1082 = vmul.f32 %v973, 1.442695
        %v1083 = vpow.pop %v1082
        %v1084 = vmul.f32 %v974, 1.442695
        %v1085 = vpow.pop %v1084
        %v1086 = vmul.f32 %v975, 1.442695
        %v1087 = vpow.pop %v1086
        %v1088 = vmul.f32 %v976, 1.442695
        %v1089 = vpow.pop %v1088
        %v1090 = vmul.f32 %v977, 1.442695
        %v1091 = vpow.pop %v1090
        %v1092 = vmul.f32 %v978, 1.442695
        %v1093 = vpow.pop %v1092
        %v1094 = vmul.f32 %v979, 1.442695
        %v1095 = vpow.pop %v1094
        %v1096 = vmul.f32 %v980, 1.442695
        %v1097 = vpow.pop %v1096
        %v1098 = vmul.f32 %v981, 1.442695
        %v1099 = vpow.pop %v1098
        %v1100 = vmul.f32 %v982, 1.442695
        %v1101 = vpow.pop %v1100
        %v1102 = vmul.f32 %v983, 1.442695
        %v1103 = vpow.pop %v1102
        %v1104 = vmul.f32 %v984, 1.442695
        %v1105 = vpow.pop %v1104
        %v1106 = vmul.f32 %v985, 1.442695
        %v1107 = vpow.pop %v1106
        %v1108 = vmul.f32 %v986, 1.442695
        %v1109 = vpow.pop %v1108
        %v1110 = vmul.f32 %v987, 1.442695
        %v1111 = vpow.pop %v1110
        %v1112 = vmul.f32 %v988, 1.442695
        %v1113 = vpow.pop %v1112
        %v1114 = vmul.f32 %v989, 1.442695
        %v1115 = vpow.pop %v1114
        %v1116 = vmul.f32 %v990, 1.442695
        %v1117 = vpow.pop %v1116
        %v1118 = vmul.f32 %v991, 1.442695
        %v1119 = vpow.pop %v1118
        %v1120 = vadd.f32 %v993, %v995
        %1121 = vadd.xlane.f32.xlu0 %v1120
        %v1122 = vpop.xlane.xlu0 %1121
        %v1123 = vadd.f32 %v997, %v999
        %1124 = vadd.xlane.f32.xlu0 %v1123
        %v1125 = vpop.xlane.xlu0 %1124
        %v1126 = vadd.f32 %v1001, %v1003
        %1127 = vadd.xlane.f32.xlu0 %v1126
        %v1128 = vpop.xlane.xlu0 %1127
        %v1129 = vadd.f32 %v1005, %v1007
        %1130 = vadd.xlane.f32.xlu0 %v1129
        %v1131 = vpop.xlane.xlu0 %1130
        %v1132 = vadd.f32 %v1009, %v1011
        %1133 = vadd.xlane.f32.xlu0 %v1132
        %v1134 = vpop.xlane.xlu0 %1133
        %v1135 = vadd.f32 %v1013, %v1015
        %1136 = vadd.xlane.f32.xlu0 %v1135
        %v1137 = vpop.xlane.xlu0 %1136
        %v1138 = vadd.f32 %v1017, %v1019
        %1139 = vadd.xlane.f32.xlu0 %v1138
        %v1140 = vpop.xlane.xlu0 %1139
        %v1141 = vadd.f32 %v1021, %v1023
        %1142 = vadd.xlane.f32.xlu0 %v1141
        %v1143 = vpop.xlane.xlu0 %1142
        %v1144 = vadd.f32 %v1025, %v1027
        %1145 = vadd.xlane.f32.xlu0 %v1144
        %v1146 = vpop.xlane.xlu0 %1145
        %v1147 = vadd.f32 %v1029, %v1031
        %1148 = vadd.xlane.f32.xlu0 %v1147
        %v1149 = vpop.xlane.xlu0 %1148
        %v1150 = vadd.f32 %v1033, %v1035
        %1151 = vadd.xlane.f32.xlu0 %v1150
        %v1152 = vpop.xlane.xlu0 %1151
        %v1153 = vadd.f32 %v1037, %v1039
        %1154 = vadd.xlane.f32.xlu0 %v1153
        %v1155 = vpop.xlane.xlu0 %1154
        %v1156 = vadd.f32 %v1041, %v1043
        %1157 = vadd.xlane.f32.xlu0 %v1156
        %v1158 = vpop.xlane.xlu0 %1157
        %v1159 = vadd.f32 %v1045, %v1047
        %1160 = vadd.xlane.f32.xlu0 %v1159
        %v1161 = vpop.xlane.xlu0 %1160
        %v1162 = vadd.f32 %v1049, %v1051
        %1163 = vadd.xlane.f32.xlu0 %v1162
        %v1164 = vpop.xlane.xlu0 %1163
        %v1165 = vadd.f32 %v1053, %v1055
        %1166 = vadd.xlane.f32.xlu0 %v1165
        %v1167 = vpop.xlane.xlu0 %1166
        %v1168 = vadd.f32 %v1057, %v1059
        %1169 = vadd.xlane.f32.xlu0 %v1168
        %v1170 = vpop.xlane.xlu0 %1169
        %v1171 = vadd.f32 %v1061, %v1063
        %1172 = vadd.xlane.f32.xlu0 %v1171
        %v1173 = vpop.xlane.xlu0 %1172
        %v1174 = vadd.f32 %v1065, %v1067
        %1175 = vadd.xlane.f32.xlu0 %v1174
        %v1176 = vpop.xlane.xlu0 %1175
        %v1177 = vadd.f32 %v1069, %v1071
        %1178 = vadd.xlane.f32.xlu0 %v1177
        %v1179 = vpop.xlane.xlu0 %1178
        %v1180 = vadd.f32 %v1073, %v1075
        %1181 = vadd.xlane.f32.xlu0 %v1180
        %v1182 = vpop.xlane.xlu0 %1181
        %v1183 = vadd.f32 %v1077, %v1079
        %1184 = vadd.xlane.f32.xlu0 %v1183
        %v1185 = vpop.xlane.xlu0 %1184
        %v1186 = vadd.f32 %v1081, %v1083
        %1187 = vadd.xlane.f32.xlu0 %v1186
        %v1188 = vpop.xlane.xlu0 %1187
        %v1189 = vadd.f32 %v1085, %v1087
        %1190 = vadd.xlane.f32.xlu0 %v1189
        %v1191 = vpop.xlane.xlu0 %1190
        %v1192 = vadd.f32 %v1089, %v1091
        %1193 = vadd.xlane.f32.xlu0 %v1192
        %v1194 = vpop.xlane.xlu0 %1193
        %v1195 = vadd.f32 %v1093, %v1095
        %1196 = vadd.xlane.f32.xlu0 %v1195
        %v1197 = vpop.xlane.xlu0 %1196
        %v1198 = vadd.f32 %v1097, %v1099
        %1199 = vadd.xlane.f32.xlu0 %v1198
        %v1200 = vpop.xlane.xlu0 %1199
        %v1201 = vadd.f32 %v1101, %v1103
        %1202 = vadd.xlane.f32.xlu0 %v1201
        %v1203 = vpop.xlane.xlu0 %1202
        %v1204 = vadd.f32 %v1105, %v1107
        %1205 = vadd.xlane.f32.xlu0 %v1204
        %v1206 = vpop.xlane.xlu0 %1205
        %v1207 = vadd.f32 %v1109, %v1111
        %1208 = vadd.xlane.f32.xlu0 %v1207
        %v1209 = vpop.xlane.xlu0 %1208
        %v1210 = vadd.f32 %v1113, %v1115
        %1211 = vadd.xlane.f32.xlu0 %v1210
        %v1212 = vpop.xlane.xlu0 %1211
        %v1213 = vadd.f32 %v1117, %v1119
        %1214 = vadd.xlane.f32.xlu0 %v1213
        %v1215 = vpop.xlane.xlu0 %1214
        %v1216 = vrcp.pop %v1122
        %v1217 = vrcp.pop %v1125
        %v1218 = vrcp.pop %v1128
        %v1219 = vrcp.pop %v1131
        %v1220 = vrcp.pop %v1134
        %v1221 = vrcp.pop %v1137
        %v1222 = vrcp.pop %v1140
        %v1223 = vrcp.pop %v1143
        %v1224 = vrcp.pop %v1146
        %v1225 = vrcp.pop %v1149
        %v1226 = vrcp.pop %v1152
        %v1227 = vrcp.pop %v1155
        %v1228 = vrcp.pop %v1158
        %v1229 = vrcp.pop %v1161
        %v1230 = vrcp.pop %v1164
        %v1231 = vrcp.pop %v1167
        %v1232 = vrcp.pop %v1170
        %v1233 = vrcp.pop %v1173
        %v1234 = vrcp.pop %v1176
        %v1235 = vrcp.pop %v1179
        %v1236 = vrcp.pop %v1182
        %v1237 = vrcp.pop %v1185
        %v1238 = vrcp.pop %v1188
        %v1239 = vrcp.pop %v1191
        %v1240 = vrcp.pop %v1194
        %v1241 = vrcp.pop %v1197
        %v1242 = vrcp.pop %v1200
        %v1243 = vrcp.pop %v1203
        %v1244 = vrcp.pop %v1206
        %v1245 = vrcp.pop %v1209
        %v1246 = vrcp.pop %v1212
        %v1247 = vrcp.pop %v1215
        %v1248 = vmul.f32 %v1122, %v1216
        %v1249 = vmul.f32 %v1125, %v1217
        %v1250 = vmul.f32 %v1128, %v1218
        %v1251 = vmul.f32 %v1131, %v1219
        %v1252 = vmul.f32 %v1134, %v1220
        %v1253 = vmul.f32 %v1137, %v1221
        %v1254 = vmul.f32 %v1140, %v1222
        %v1255 = vmul.f32 %v1143, %v1223
        %v1256 = vmul.f32 %v1146, %v1224
        %v1257 = vmul.f32 %v1149, %v1225
        %v1258 = vmul.f32 %v1152, %v1226
        %v1259 = vmul.f32 %v1155, %v1227
        %v1260 = vmul.f32 %v1158, %v1228
        %v1261 = vmul.f32 %v1161, %v1229
        %v1262 = vmul.f32 %v1164, %v1230
        %v1263 = vmul.f32 %v1167, %v1231
        %v1264 = vmul.f32 %v1170, %v1232
        %v1265 = vmul.f32 %v1173, %v1233
        %v1266 = vmul.f32 %v1176, %v1234
        %v1267 = vmul.f32 %v1179, %v1235
        %v1268 = vmul.f32 %v1182, %v1236
        %v1269 = vmul.f32 %v1185, %v1237
        %v1270 = vmul.f32 %v1188, %v1238
        %v1271 = vmul.f32 %v1191, %v1239
        %v1272 = vmul.f32 %v1194, %v1240
        %v1273 = vmul.f32 %v1197, %v1241
        %v1274 = vmul.f32 %v1200, %v1242
        %v1275 = vmul.f32 %v1203, %v1243
        %v1276 = vmul.f32 %v1206, %v1244
        %v1277 = vmul.f32 %v1209, %v1245
        %v1278 = vmul.f32 %v1212, %v1246
        %v1279 = vmul.f32 %v1215, %v1247
        %v1280 = vsub.f32 2.0, %v1248
        %v1281 = vsub.f32 2.0, %v1249
        %v1282 = vsub.f32 2.0, %v1250
        %v1283 = vsub.f32 2.0, %v1251
        %v1284 = vsub.f32 2.0, %v1252
        %v1285 = vsub.f32 2.0, %v1253
        %v1286 = vsub.f32 2.0, %v1254
        %v1287 = vsub.f32 2.0, %v1255
        %v1288 = vsub.f32 2.0, %v1256
        %v1289 = vsub.f32 2.0, %v1257
        %v1290 = vsub.f32 2.0, %v1258
        %v1291 = vsub.f32 2.0, %v1259
        %v1292 = vsub.f32 2.0, %v1260
        %v1293 = vsub.f32 2.0, %v1261
        %v1294 = vsub.f32 2.0, %v1262
        %v1295 = vsub.f32 2.0, %v1263
        %v1296 = vsub.f32 2.0, %v1264
        %v1297 = vsub.f32 2.0, %v1265
        %v1298 = vsub.f32 2.0, %v1266
        %v1299 = vsub.f32 2.0, %v1267
        %v1300 = vsub.f32 2.0, %v1268
        %v1301 = vsub.f32 2.0, %v1269
        %v1302 = vsub.f32 2.0, %v1270
        %v1303 = vsub.f32 2.0, %v1271
        %v1304 = vsub.f32 2.0, %v1272
        %v1305 = vsub.f32 2.0, %v1273
        %v1306 = vsub.f32 2.0, %v1274
        %v1307 = vsub.f32 2.0, %v1275
        %v1308 = vsub.f32 2.0, %v1276
        %v1309 = vsub.f32 2.0, %v1277
        %v1310 = vsub.f32 2.0, %v1278
        %v1311 = vsub.f32 2.0, %v1279
        %v1312 = vmul.f32 %v1216, %v1280
        %v1313 = vmul.f32 %v1217, %v1281
        %v1314 = vmul.f32 %v1218, %v1282
        %v1315 = vmul.f32 %v1219, %v1283
        %v1316 = vmul.f32 %v1220, %v1284
        %v1317 = vmul.f32 %v1221, %v1285
        %v1318 = vmul.f32 %v1222, %v1286
        %v1319 = vmul.f32 %v1223, %v1287
        %v1320 = vmul.f32 %v1224, %v1288
        %v1321 = vmul.f32 %v1225, %v1289
        %v1322 = vmul.f32 %v1226, %v1290
        %v1323 = vmul.f32 %v1227, %v1291
        %v1324 = vmul.f32 %v1228, %v1292
        %v1325 = vmul.f32 %v1229, %v1293
        %v1326 = vmul.f32 %v1230, %v1294
        %v1327 = vmul.f32 %v1231, %v1295
        %v1328 = vmul.f32 %v1232, %v1296
        %v1329 = vmul.f32 %v1233, %v1297
        %v1330 = vmul.f32 %v1234, %v1298
        %v1331 = vmul.f32 %v1235, %v1299
        %v1332 = vmul.f32 %v1236, %v1300
        %v1333 = vmul.f32 %v1237, %v1301
        %v1334 = vmul.f32 %v1238, %v1302
        %v1335 = vmul.f32 %v1239, %v1303
        %v1336 = vmul.f32 %v1240, %v1304
        %v1337 = vmul.f32 %v1241, %v1305
        %v1338 = vmul.f32 %v1242, %v1306
        %v1339 = vmul.f32 %v1243, %v1307
        %v1340 = vmul.f32 %v1244, %v1308
        %v1341 = vmul.f32 %v1245, %v1309
        %v1342 = vmul.f32 %v1246, %v1310
        %v1343 = vmul.f32 %v1247, %v1311
        %v1344 = vmul.f32 %v993, %v1312
        %v1345 = vmul.f32 %v995, %v1312
        %v1346 = vmul.f32 %v997, %v1313
        %v1347 = vmul.f32 %v999, %v1313
        %v1348 = vmul.f32 %v1001, %v1314
        %v1349 = vmul.f32 %v1003, %v1314
        %v1350 = vmul.f32 %v1005, %v1315
        %v1351 = vmul.f32 %v1007, %v1315
        %v1352 = vmul.f32 %v1009, %v1316
        %v1353 = vmul.f32 %v1011, %v1316
        %v1354 = vmul.f32 %v1013, %v1317
        %v1355 = vmul.f32 %v1015, %v1317
        %v1356 = vmul.f32 %v1017, %v1318
        %v1357 = vmul.f32 %v1019, %v1318
        %v1358 = vmul.f32 %v1021, %v1319
        %v1359 = vmul.f32 %v1023, %v1319
        %v1360 = vmul.f32 %v1025, %v1320
        %v1361 = vmul.f32 %v1027, %v1320
        %v1362 = vmul.f32 %v1029, %v1321
        %v1363 = vmul.f32 %v1031, %v1321
        %v1364 = vmul.f32 %v1033, %v1322
        %v1365 = vmul.f32 %v1035, %v1322
        %v1366 = vmul.f32 %v1037, %v1323
        %v1367 = vmul.f32 %v1039, %v1323
        %v1368 = vmul.f32 %v1041, %v1324
        %v1369 = vmul.f32 %v1043, %v1324
        %v1370 = vmul.f32 %v1045, %v1325
        %v1371 = vmul.f32 %v1047, %v1325
        %v1372 = vmul.f32 %v1049, %v1326
        %v1373 = vmul.f32 %v1051, %v1326
        %v1374 = vmul.f32 %v1053, %v1327
        %v1375 = vmul.f32 %v1055, %v1327
        %v1376 = vmul.f32 %v1057, %v1328
        %v1377 = vmul.f32 %v1059, %v1328
        %v1378 = vmul.f32 %v1061, %v1329
        %v1379 = vmul.f32 %v1063, %v1329
        %v1380 = vmul.f32 %v1065, %v1330
        %v1381 = vmul.f32 %v1067, %v1330
        %v1382 = vmul.f32 %v1069, %v1331
        %v1383 = vmul.f32 %v1071, %v1331
        %v1384 = vmul.f32 %v1073, %v1332
        %v1385 = vmul.f32 %v1075, %v1332
        %v1386 = vmul.f32 %v1077, %v1333
        %v1387 = vmul.f32 %v1079, %v1333
        %v1388 = vmul.f32 %v1081, %v1334
        %v1389 = vmul.f32 %v1083, %v1334
        %v1390 = vmul.f32 %v1085, %v1335
        %v1391 = vmul.f32 %v1087, %v1335
        %v1392 = vmul.f32 %v1089, %v1336
        %v1393 = vmul.f32 %v1091, %v1336
        %v1394 = vmul.f32 %v1093, %v1337
        %v1395 = vmul.f32 %v1095, %v1337
        %v1396 = vmul.f32 %v1097, %v1338
        %v1397 = vmul.f32 %v1099, %v1338
        %v1398 = vmul.f32 %v1101, %v1339
        %v1399 = vmul.f32 %v1103, %v1339
        %v1400 = vmul.f32 %v1105, %v1340
        %v1401 = vmul.f32 %v1107, %v1340
        %v1402 = vmul.f32 %v1109, %v1341
        %v1403 = vmul.f32 %v1111, %v1341
        %v1404 = vmul.f32 %v1113, %v1342
        %v1405 = vmul.f32 %v1115, %v1342
        %v1406 = vmul.f32 %v1117, %v1343
        %v1407 = vmul.f32 %v1119, %v1343
        %v1408 = vpack.c.bf16 %v1346, %v1344
        %v1409 = vpack.c.bf16 %v1347, %v1345
        %v1410 = vpack.c.bf16 %v1350, %v1348
        %v1411 = vpack.c.bf16 %v1351, %v1349
        %v1412 = vpack.c.bf16 %v1354, %v1352
        %v1413 = vpack.c.bf16 %v1355, %v1353
        %v1414 = vpack.c.bf16 %v1358, %v1356
        %v1415 = vpack.c.bf16 %v1359, %v1357
        %v1416 = vpack.c.bf16 %v1362, %v1360
        %v1417 = vpack.c.bf16 %v1363, %v1361
        %v1418 = vpack.c.bf16 %v1366, %v1364
        %v1419 = vpack.c.bf16 %v1367, %v1365
        %v1420 = vpack.c.bf16 %v1370, %v1368
        %v1421 = vpack.c.bf16 %v1371, %v1369
        %v1422 = vpack.c.bf16 %v1374, %v1372
        %v1423 = vpack.c.bf16 %v1375, %v1373
        %v1424 = vpack.c.bf16 %v1378, %v1376
        %v1425 = vpack.c.bf16 %v1379, %v1377
        %v1426 = vpack.c.bf16 %v1382, %v1380
        %v1427 = vpack.c.bf16 %v1383, %v1381
        %v1428 = vpack.c.bf16 %v1386, %v1384
        %v1429 = vpack.c.bf16 %v1387, %v1385
        %v1430 = vpack.c.bf16 %v1390, %v1388
        %v1431 = vpack.c.bf16 %v1391, %v1389
        %v1432 = vpack.c.bf16 %v1394, %v1392
        %v1433 = vpack.c.bf16 %v1395, %v1393
        %v1434 = vpack.c.bf16 %v1398, %v1396
        %v1435 = vpack.c.bf16 %v1399, %v1397
        %v1436 = vpack.c.bf16 %v1402, %v1400
        %v1437 = vpack.c.bf16 %v1403, %v1401
        %v1438 = vpack.c.bf16 %v1406, %v1404
        %v1439 = vpack.c.bf16 %v1407, %v1405
        %v1440 = vld [vmem:[%s370] sm:$0xf]
        %v1441 = vld [vmem:[%s370 + $0x4] sm:$0xf]
        %v1442 = vld [vmem:[%s370 + $0x8] sm:$0xf]
        %v1443 = vld [vmem:[%s370 + $0xc] sm:$0xf]
        %v1444 = vld [vmem:[%s370 + $0x10] sm:$0xf]
        %v1445 = vld [vmem:[%s370 + $0x14] sm:$0xf]
        %v1446 = vld [vmem:[%s370 + $0x18] sm:$0xf]
        %v1447 = vld [vmem:[%s370 + $0x1c] sm:$0xf]
        %v1448 = vld [vmem:[%s370 + $0x20] sm:$0xf]
        %v1449 = vld [vmem:[%s370 + $0x24] sm:$0xf]
        %v1450 = vld [vmem:[%s370 + $0x28] sm:$0xf]
        %v1451 = vld [vmem:[%s370 + $0x2c] sm:$0xf]
        %v1452 = vld [vmem:[%s370 + $0x30] sm:$0xf]
        %v1453 = vld [vmem:[%s370 + $0x34] sm:$0xf]
        %v1454 = vld [vmem:[%s370 + $0x38] sm:$0xf]
        %v1455 = vld [vmem:[%s370 + $0x3c] sm:$0xf]
        %v1456 = vld [vmem:[%s370 + $0x40] sm:$0xf]
        %v1457 = vld [vmem:[%s370 + $0x44] sm:$0xf]
        %v1458 = vld [vmem:[%s370 + $0x48] sm:$0xf]
        %v1459 = vld [vmem:[%s370 + $0x4c] sm:$0xf]
        %v1460 = vld [vmem:[%s370 + $0x50] sm:$0xf]
        %v1461 = vld [vmem:[%s370 + $0x54] sm:$0xf]
        %v1462 = vld [vmem:[%s370 + $0x58] sm:$0xf]
        %v1463 = vld [vmem:[%s370 + $0x5c] sm:$0xf]
        %v1464 = vld [vmem:[%s370 + $0x60] sm:$0xf]
        %v1465 = vld [vmem:[%s370 + $0x64] sm:$0xf]
        %v1466 = vld [vmem:[%s370 + $0x68] sm:$0xf]
        %v1467 = vld [vmem:[%s370 + $0x6c] sm:$0xf]
        %v1468 = vld [vmem:[%s370 + $0x70] sm:$0xf]
        %v1469 = vld [vmem:[%s370 + $0x74] sm:$0xf]
        %v1470 = vld [vmem:[%s370 + $0x78] sm:$0xf]
        %v1471 = vld [vmem:[%s370 + $0x7c] sm:$0xf]
        %v1504 = vunpack.c.l.b16 %v1440
        %v1505 = vunpack.c.l.b16 %v1441
        %v1506 = vunpack.c.l.b16 %v1442
        %v1507 = vunpack.c.l.b16 %v1443
        %v1508 = vunpack.c.l.b16 %v1444
        %v1509 = vunpack.c.l.b16 %v1445
        %v1510 = vunpack.c.l.b16 %v1446
        %v1511 = vunpack.c.l.b16 %v1447
        %v1512 = vunpack.c.l.b16 %v1448
        %v1513 = vunpack.c.l.b16 %v1449
        %v1514 = vunpack.c.l.b16 %v1450
        %v1515 = vunpack.c.l.b16 %v1451
        %v1516 = vunpack.c.l.b16 %v1452
        %v1517 = vunpack.c.l.b16 %v1453
        %v1518 = vunpack.c.l.b16 %v1454
        %v1519 = vunpack.c.l.b16 %v1455
        %v1520 = vunpack.c.l.b16 %v1456
        %v1521 = vunpack.c.l.b16 %v1457
        %v1522 = vunpack.c.l.b16 %v1458
        %v1523 = vunpack.c.l.b16 %v1459
        %v1524 = vunpack.c.l.b16 %v1460
        %v1525 = vunpack.c.l.b16 %v1461
        %v1526 = vunpack.c.l.b16 %v1462
        %v1527 = vunpack.c.l.b16 %v1463
        %v1528 = vunpack.c.l.b16 %v1464
        %v1529 = vunpack.c.l.b16 %v1465
        %v1530 = vunpack.c.l.b16 %v1466
        %v1531 = vunpack.c.l.b16 %v1467
        %v1532 = vunpack.c.l.b16 %v1468
        %v1533 = vunpack.c.l.b16 %v1469
        %v1534 = vunpack.c.l.b16 %v1470
        %v1535 = vunpack.c.l.b16 %v1471
        %v1536 = vpack.c.b16 %v1505, %v1504
        %v1537 = vpack.c.b16 %v1507, %v1506
        %v1538 = vpack.c.b16 %v1509, %v1508
        %v1539 = vpack.c.b16 %v1511, %v1510
        %v1540 = vpack.c.b16 %v1513, %v1512
        %v1541 = vpack.c.b16 %v1515, %v1514
        %v1542 = vpack.c.b16 %v1517, %v1516
        %v1543 = vpack.c.b16 %v1519, %v1518
        %v1544 = vpack.c.b16 %v1521, %v1520
        %v1545 = vpack.c.b16 %v1523, %v1522
        %v1546 = vpack.c.b16 %v1525, %v1524
        %v1547 = vpack.c.b16 %v1527, %v1526
        %v1548 = vpack.c.b16 %v1529, %v1528
        %v1549 = vpack.c.b16 %v1531, %v1530
        %v1550 = vpack.c.b16 %v1533, %v1532
        %v1551 = vpack.c.b16 %v1535, %v1534
        %1568 = vmatprep.subr.bf16.mxu0 0
        %1569 = vmatpush1.bf16.msra.mxu0 %v1536
        %1570 = vmatprep.subr.bf16.mxu0 0
        %1571 = vmatpush1.bf16.msra.mxu0 %v1537
        %1572 = vmatprep.subr.bf16.mxu0 0
        %1573 = vmatpush1.bf16.msra.mxu0 %v1538
        %1574 = vmatprep.subr.bf16.mxu0 0
        %1575 = vmatpush1.bf16.msra.mxu0 %v1539
        %1576 = vmatprep.subr.bf16.mxu0 0
        %1577 = vmatpush1.bf16.msra.mxu0 %v1540
        %1578 = vmatprep.subr.bf16.mxu0 0
        %1579 = vmatpush1.bf16.msra.mxu0 %v1541
        %1580 = vmatprep.subr.bf16.mxu0 0
        %1581 = vmatpush1.bf16.msra.mxu0 %v1542
        %1582 = vmatprep.subr.bf16.mxu0 0
        %1583 = vmatpush1.bf16.msra.mxu0 %v1543
        %1584 = vmatprep.subr.bf16.mxu0 0
        %1585 = vmatpush1.bf16.msra.mxu0 %v1544
        %1586 = vmatprep.subr.bf16.mxu0 0
        %1587 = vmatpush1.bf16.msra.mxu0 %v1545
        %1588 = vmatprep.subr.bf16.mxu0 0
        %1589 = vmatpush1.bf16.msra.mxu0 %v1546
        %1590 = vmatprep.subr.bf16.mxu0 0
        %1591 = vmatpush1.bf16.msra.mxu0 %v1547
        %1592 = vmatprep.subr.bf16.mxu0 0
        %1593 = vmatpush1.bf16.msra.mxu0 %v1548
        %1594 = vmatprep.subr.bf16.mxu0 0
        %1595 = vmatpush1.bf16.msra.mxu0 %v1549
        %1596 = vmatprep.subr.bf16.mxu0 0
        %1597 = vmatpush1.bf16.msra.mxu0 %v1550
        %1598 = vmatprep.subr.bf16.mxu0 0
        %1599 = vmatpush1.bf16.msra.mxu0 %v1551
        %1600 = vmatprep.mubr.bf16.mxu0 %v1409
        %1601 = vmatmul.mubr.bf16.gmra.mrb[0].mxu0 %v1408
        %v1602 = vpop.f32.mrb[0].mxu0
        %v1603 = vadd.f32 0.0, %v1602
        %v1604 = vpop.f32.mrb[0].mxu0
        %v1605 = vpop.f32.mrb[0].mxu0
        %v1606 = vadd.f32 0.0, %v1605
        %v1607 = vpop.f32.mrb[0].mxu0
        %1608 = vmatprep.mubr.bf16.mxu0 %v1411
        %1609 = vmatmul.mubr.bf16.gmra.mrb[0].mxu0 %v1410
        %v1610 = vpop.f32.mrb[0].mxu0
        %v1611 = vadd.f32 0.0, %v1610
        %v1612 = vpop.f32.mrb[0].mxu0
        %v1613 = vpop.f32.mrb[0].mxu0
        %v1614 = vadd.f32 0.0, %v1613
        %v1615 = vpop.f32.mrb[0].mxu0
        %1616 = vmatprep.mubr.bf16.mxu0 %v1413
        %1617 = vmatmul.mubr.bf16.gmra.mrb[0].mxu0 %v1412
        %v1618 = vpop.f32.mrb[0].mxu0
        %v1619 = vadd.f32 0.0, %v1618
        %v1620 = vpop.f32.mrb[0].mxu0
        %v1621 = vpop.f32.mrb[0].mxu0
        %v1622 = vadd.f32 0.0, %v1621
        %v1623 = vpop.f32.mrb[0].mxu0
        %1624 = vmatprep.mubr.bf16.mxu0 %v1415
        %1625 = vmatmul.mubr.bf16.gmra.mrb[0].mxu0 %v1414
        %v1626 = vpop.f32.mrb[0].mxu0
        %v1627 = vadd.f32 0.0, %v1626
        %v1628 = vpop.f32.mrb[0].mxu0
        %v1629 = vpop.f32.mrb[0].mxu0
        %v1630 = vadd.f32 0.0, %v1629
        %v1631 = vpop.f32.mrb[0].mxu0
        %1632 = vmatprep.mubr.bf16.mxu0 %v1417
        %1633 = vmatmul.mubr.bf16.gmra.mrb[0].mxu0 %v1416
        %v1634 = vpop.f32.mrb[0].mxu0
        %v1635 = vadd.f32 0.0, %v1634
        %v1636 = vpop.f32.mrb[0].mxu0
        %v1637 = vpop.f32.mrb[0].mxu0
        %v1638 = vadd.f32 0.0, %v1637
        %v1639 = vpop.f32.mrb[0].mxu0
        %1640 = vmatprep.mubr.bf16.mxu0 %v1419
        %1641 = vmatmul.mubr.bf16.gmra.mrb[0].mxu0 %v1418
        %v1642 = vpop.f32.mrb[0].mxu0
        %v1643 = vadd.f32 0.0, %v1642
        %v1644 = vpop.f32.mrb[0].mxu0
        %v1645 = vpop.f32.mrb[0].mxu0
        %v1646 = vadd.f32 0.0, %v1645
        %v1647 = vpop.f32.mrb[0].mxu0
        %1648 = vmatprep.mubr.bf16.mxu0 %v1421
        %1649 = vmatmul.mubr.bf16.gmra.mrb[0].mxu0 %v1420
        %v1650 = vpop.f32.mrb[0].mxu0
        %v1651 = vadd.f32 0.0, %v1650
        %v1652 = vpop.f32.mrb[0].mxu0
        %v1653 = vpop.f32.mrb[0].mxu0
        %v1654 = vadd.f32 0.0, %v1653
        %v1655 = vpop.f32.mrb[0].mxu0
        %1656 = vmatprep.mubr.bf16.mxu0 %v1423
        %1657 = vmatmul.mubr.bf16.gmra.mrb[0].mxu0 %v1422
        %v1658 = vpop.f32.mrb[0].mxu0
        %v1659 = vadd.f32 0.0, %v1658
        %v1660 = vpop.f32.mrb[0].mxu0
        %v1661 = vpop.f32.mrb[0].mxu0
        %v1662 = vadd.f32 0.0, %v1661
        %v1663 = vpop.f32.mrb[0].mxu0
        %1664 = vmatprep.mubr.bf16.mxu0 %v1425
        %1665 = vmatmul.mubr.bf16.gmra.mrb[0].mxu0 %v1424
        %v1666 = vpop.f32.mrb[0].mxu0
        %v1667 = vadd.f32 0.0, %v1666
        %v1668 = vpop.f32.mrb[0].mxu0
        %v1669 = vpop.f32.mrb[0].mxu0
        %v1670 = vadd.f32 0.0, %v1669
        %v1671 = vpop.f32.mrb[0].mxu0
        %1672 = vmatprep.mubr.bf16.mxu0 %v1427
        %1673 = vmatmul.mubr.bf16.gmra.mrb[0].mxu0 %v1426
        %v1674 = vpop.f32.mrb[0].mxu0
        %v1675 = vadd.f32 0.0, %v1674
        %v1676 = vpop.f32.mrb[0].mxu0
        %v1677 = vpop.f32.mrb[0].mxu0
        %v1678 = vadd.f32 0.0, %v1677
        %v1679 = vpop.f32.mrb[0].mxu0
        %1680 = vmatprep.mubr.bf16.mxu0 %v1429
        %1681 = vmatmul.mubr.bf16.gmra.mrb[0].mxu0 %v1428
        %v1682 = vpop.f32.mrb[0].mxu0
        %v1683 = vadd.f32 0.0, %v1682
        %v1684 = vpop.f32.mrb[0].mxu0
        %v1685 = vpop.f32.mrb[0].mxu0
        %v1686 = vadd.f32 0.0, %v1685
        %v1687 = vpop.f32.mrb[0].mxu0
        %1688 = vmatprep.mubr.bf16.mxu0 %v1431
        %1689 = vmatmul.mubr.bf16.gmra.mrb[0].mxu0 %v1430
        %v1690 = vpop.f32.mrb[0].mxu0
        %v1691 = vadd.f32 0.0, %v1690
        %v1692 = vpop.f32.mrb[0].mxu0
        %v1693 = vpop.f32.mrb[0].mxu0
        %v1694 = vadd.f32 0.0, %v1693
        %v1695 = vpop.f32.mrb[0].mxu0
        %1696 = vmatprep.mubr.bf16.mxu0 %v1433
        %1697 = vmatmul.mubr.bf16.gmra.mrb[0].mxu0 %v1432
        %v1698 = vpop.f32.mrb[0].mxu0
        %v1699 = vadd.f32 0.0, %v1698
        %v1700 = vpop.f32.mrb[0].mxu0
        %v1701 = vpop.f32.mrb[0].mxu0
        %v1702 = vadd.f32 0.0, %v1701
        %v1703 = vpop.f32.mrb[0].mxu0
        %1704 = vmatprep.mubr.bf16.mxu0 %v1435
        %1705 = vmatmul.mubr.bf16.gmra.mrb[0].mxu0 %v1434
        %v1706 = vpop.f32.mrb[0].mxu0
        %v1707 = vadd.f32 0.0, %v1706
        %v1708 = vpop.f32.mrb[0].mxu0
        %v1709 = vpop.f32.mrb[0].mxu0
        %v1710 = vadd.f32 0.0, %v1709
        %v1711 = vpop.f32.mrb[0].mxu0
        %1712 = vmatprep.mubr.bf16.mxu0 %v1437
        %1713 = vmatmul.mubr.bf16.gmra.mrb[0].mxu0 %v1436
        %v1714 = vpop.f32.mrb[0].mxu0
        %v1715 = vadd.f32 0.0, %v1714
        %v1716 = vpop.f32.mrb[0].mxu0
        %v1717 = vpop.f32.mrb[0].mxu0
        %v1718 = vadd.f32 0.0, %v1717
        %v1719 = vpop.f32.mrb[0].mxu0
        %1720 = vmatprep.mubr.bf16.mxu0 %v1439
        %1721 = vmatmul.mubr.bf16.gmra.mrb[0].mxu0 %v1438
        %v1722 = vpop.f32.mrb[0].mxu0
        %v1723 = vadd.f32 0.0, %v1722
        %v1724 = vpop.f32.mrb[0].mxu0
        %v1725 = vpop.f32.mrb[0].mxu0
        %v1726 = vadd.f32 0.0, %v1725
        %v1727 = vpop.f32.mrb[0].mxu0
        %1728 = vdwg.mxu0
        %s1729 = sld [smem:[#allocation2]]
        %v1730 = vstv %s1729
        %v1731 = vmul.f32 %v1730, %v1603
        %v1732 = vmul.f32 %v1730, %v1606
        %v1733 = vmul.f32 %v1730, %v1611
        %v1734 = vmul.f32 %v1730, %v1614
        %v1735 = vmul.f32 %v1730, %v1619
        %v1736 = vmul.f32 %v1730, %v1622
        %v1737 = vmul.f32 %v1730, %v1627
        %v1738 = vmul.f32 %v1730, %v1630
        %v1739 = vmul.f32 %v1730, %v1635
        %v1740 = vmul.f32 %v1730, %v1638
        %v1741 = vmul.f32 %v1730, %v1643
        %v1742 = vmul.f32 %v1730, %v1646
        %v1743 = vmul.f32 %v1730, %v1651
        %v1744 = vmul.f32 %v1730, %v1654
        %v1745 = vmul.f32 %v1730, %v1659
        %v1746 = vmul.f32 %v1730, %v1662
        %v1747 = vmul.f32 %v1730, %v1667
        %v1748 = vmul.f32 %v1730, %v1670
        %v1749 = vmul.f32 %v1730, %v1675
        %v1750 = vmul.f32 %v1730, %v1678
        %v1751 = vmul.f32 %v1730, %v1683
        %v1752 = vmul.f32 %v1730, %v1686
        %v1753 = vmul.f32 %v1730, %v1691
        %v1754 = vmul.f32 %v1730, %v1694
        %v1755 = vmul.f32 %v1730, %v1699
        %v1756 = vmul.f32 %v1730, %v1702
        %v1757 = vmul.f32 %v1730, %v1707
        %v1758 = vmul.f32 %v1730, %v1710
        %v1759 = vmul.f32 %v1730, %v1715
        %v1760 = vmul.f32 %v1730, %v1718
        %v1761 = vmul.f32 %v1730, %v1723
        %v1762 = vmul.f32 %v1730, %v1726
        %v1763 = vld [vmem:[%s349] sm:$0xff]
        %v1764 = vld [vmem:[%s349 + $0x8] sm:$0xff]
        %v1765 = vld [vmem:[%s349 + $0x10] sm:$0xff]
        %v1766 = vld [vmem:[%s349 + $0x18] sm:$0xff]
        %v1767 = vld [vmem:[%s349 + $0x20] sm:$0xff]
        %v1768 = vld [vmem:[%s349 + $0x28] sm:$0xff]
        %v1769 = vld [vmem:[%s349 + $0x30] sm:$0xff]
        %v1770 = vld [vmem:[%s349 + $0x38] sm:$0xff]
        %v1771 = vld [vmem:[%s349 + $0x40] sm:$0xff]
        %v1772 = vld [vmem:[%s349 + $0x48] sm:$0xff]
        %v1773 = vld [vmem:[%s349 + $0x50] sm:$0xff]
        %v1774 = vld [vmem:[%s349 + $0x58] sm:$0xff]
        %v1775 = vld [vmem:[%s349 + $0x60] sm:$0xff]
        %v1776 = vld [vmem:[%s349 + $0x68] sm:$0xff]
        %v1777 = vld [vmem:[%s349 + $0x70] sm:$0xff]
        %v1778 = vld [vmem:[%s349 + $0x78] sm:$0xff]
        %v1779 = vld [vmem:[%s349 + $0x80] sm:$0xff]
        %v1780 = vld [vmem:[%s349 + $0x88] sm:$0xff]
        %v1781 = vld [vmem:[%s349 + $0x90] sm:$0xff]
        %v1782 = vld [vmem:[%s349 + $0x98] sm:$0xff]
        %v1783 = vld [vmem:[%s349 + $0xa0] sm:$0xff]
        %v1784 = vld [vmem:[%s349 + $0xa8] sm:$0xff]
        %v1785 = vld [vmem:[%s349 + $0xb0] sm:$0xff]
        %v1786 = vld [vmem:[%s349 + $0xb8] sm:$0xff]
        %v1787 = vld [vmem:[%s349 + $0xc0] sm:$0xff]
        %v1788 = vld [vmem:[%s349 + $0xc8] sm:$0xff]
        %v1789 = vld [vmem:[%s349 + $0xd0] sm:$0xff]
        %v1790 = vld [vmem:[%s349 + $0xd8] sm:$0xff]
        %v1791 = vld [vmem:[%s349 + $0xe0] sm:$0xff]
        %v1792 = vld [vmem:[%s349 + $0xe8] sm:$0xff]
        %v1793 = vld [vmem:[%s349 + $0xf0] sm:$0xff]
        %v1794 = vld [vmem:[%s349 + $0xf8] sm:$0xff]
        %v1795 = vadd.f32 %v1731, %v1763
        %v1796 = vadd.f32 %v1732, %v1764
        %v1797 = vadd.f32 %v1733, %v1765
        %v1798 = vadd.f32 %v1734, %v1766
        %v1799 = vadd.f32 %v1735, %v1767
        %v1800 = vadd.f32 %v1736, %v1768
        %v1801 = vadd.f32 %v1737, %v1769
        %v1802 = vadd.f32 %v1738, %v1770
        %v1803 = vadd.f32 %v1739, %v1771
        %v1804 = vadd.f32 %v1740, %v1772
        %v1805 = vadd.f32 %v1741, %v1773
        %v1806 = vadd.f32 %v1742, %v1774
        %v1807 = vadd.f32 %v1743, %v1775
        %v1808 = vadd.f32 %v1744, %v1776
        %v1809 = vadd.f32 %v1745, %v1777
        %v1810 = vadd.f32 %v1746, %v1778
        %v1811 = vadd.f32 %v1747, %v1779
        %v1812 = vadd.f32 %v1748, %v1780
        %v1813 = vadd.f32 %v1749, %v1781
        %v1814 = vadd.f32 %v1750, %v1782
        %v1815 = vadd.f32 %v1751, %v1783
        %v1816 = vadd.f32 %v1752, %v1784
        %v1817 = vadd.f32 %v1753, %v1785
        %v1818 = vadd.f32 %v1754, %v1786
        %v1819 = vadd.f32 %v1755, %v1787
        %v1820 = vadd.f32 %v1756, %v1788
        %v1821 = vadd.f32 %v1757, %v1789
        %v1822 = vadd.f32 %v1758, %v1790
        %v1823 = vadd.f32 %v1759, %v1791
        %v1824 = vadd.f32 %v1760, %v1792
        %v1825 = vadd.f32 %v1761, %v1793
        %v1826 = vadd.f32 %v1762, %v1794
        %vm1827 = vcmask 261120
        %1828 = vst.msk [vmem:[%s379] sm:$0xff] %vm1827, %v1795
        %1829 = vst.msk [vmem:[%s379 + $0x8] sm:$0xff] %vm1827, %v1796
        %1830 = vst.msk [vmem:[%s379 + $0x10] sm:$0xff] %vm1827, %v1797
        %1831 = vst.msk [vmem:[%s379 + $0x18] sm:$0xff] %vm1827, %v1798
        %1832 = vst.msk [vmem:[%s379 + $0x20] sm:$0xff] %vm1827, %v1799
        %1833 = vst.msk [vmem:[%s379 + $0x28] sm:$0xff] %vm1827, %v1800
        %1834 = vst.msk [vmem:[%s379 + $0x30] sm:$0xff] %vm1827, %v1801
        %1835 = vst.msk [vmem:[%s379 + $0x38] sm:$0xff] %vm1827, %v1802
        %1836 = vst.msk [vmem:[%s379 + $0x40] sm:$0xff] %vm1827, %v1803
        %1837 = vst.msk [vmem:[%s379 + $0x48] sm:$0xff] %vm1827, %v1804
        %1838 = vst.msk [vmem:[%s379 + $0x50] sm:$0xff] %vm1827, %v1805
        %1839 = vst.msk [vmem:[%s379 + $0x58] sm:$0xff] %vm1827, %v1806
        %1840 = vst.msk [vmem:[%s379 + $0x60] sm:$0xff] %vm1827, %v1807
        %1841 = vst.msk [vmem:[%s379 + $0x68] sm:$0xff] %vm1827, %v1808
        %1842 = vst.msk [vmem:[%s379 + $0x70] sm:$0xff] %vm1827, %v1809
        %1843 = vst.msk [vmem:[%s379 + $0x78] sm:$0xff] %vm1827, %v1810
        %1844 = vst.msk [vmem:[%s379 + $0x80] sm:$0xff] %vm1827, %v1811
        %1845 = vst.msk [vmem:[%s379 + $0x88] sm:$0xff] %vm1827, %v1812
        %1846 = vst.msk [vmem:[%s379 + $0x90] sm:$0xff] %vm1827, %v1813
        %1847 = vst.msk [vmem:[%s379 + $0x98] sm:$0xff] %vm1827, %v1814
        %1848 = vst.msk [vmem:[%s379 + $0xa0] sm:$0xff] %vm1827, %v1815
        %1849 = vst.msk [vmem:[%s379 + $0xa8] sm:$0xff] %vm1827, %v1816
        %1850 = vst.msk [vmem:[%s379 + $0xb0] sm:$0xff] %vm1827, %v1817
        %1851 = vst.msk [vmem:[%s379 + $0xb8] sm:$0xff] %vm1827, %v1818
        %1852 = vst.msk [vmem:[%s379 + $0xc0] sm:$0xff] %vm1827, %v1819
        %1853 = vst.msk [vmem:[%s379 + $0xc8] sm:$0xff] %vm1827, %v1820
        %1854 = vst.msk [vmem:[%s379 + $0xd0] sm:$0xff] %vm1827, %v1821
        %1855 = vst.msk [vmem:[%s379 + $0xd8] sm:$0xff] %vm1827, %v1822
        %1856 = vst.msk [vmem:[%s379 + $0xe0] sm:$0xff] %vm1827, %v1823
        %1857 = vst.msk [vmem:[%s379 + $0xe8] sm:$0xff] %vm1827, %v1824
        %1858 = vst.msk [vmem:[%s379 + $0xf0] sm:$0xff] %vm1827, %v1825
        %1859 = vst.msk [vmem:[%s379 + $0xf8] sm:$0xff] %vm1827, %v1826
        %v1892 = vunpack.c.l.b16 %v1408
        %v1893 = vunpack.c.l.b16 %v1409
        %v1894 = vunpack.c.h.b16 %v1408
        %v1895 = vunpack.c.h.b16 %v1409
        %v1896 = vunpack.c.l.b16 %v1410
        %v1897 = vunpack.c.l.b16 %v1411
        %v1898 = vunpack.c.h.b16 %v1410
        %v1899 = vunpack.c.h.b16 %v1411
        %v1900 = vunpack.c.l.b16 %v1412
        %v1901 = vunpack.c.l.b16 %v1413
        %v1902 = vunpack.c.h.b16 %v1412
        %v1903 = vunpack.c.h.b16 %v1413
        %v1904 = vunpack.c.l.b16 %v1414
        %v1905 = vunpack.c.l.b16 %v1415
        %v1906 = vunpack.c.h.b16 %v1414
        %v1907 = vunpack.c.h.b16 %v1415
        %v1908 = vunpack.c.l.b16 %v1416
        %v1909 = vunpack.c.l.b16 %v1417
        %v1910 = vunpack.c.h.b16 %v1416
        %v1911 = vunpack.c.h.b16 %v1417
        %v1912 = vunpack.c.l.b16 %v1418
        %v1913 = vunpack.c.l.b16 %v1419
        %v1914 = vunpack.c.h.b16 %v1418
        %v1915 = vunpack.c.h.b16 %v1419
        %v1916 = vunpack.c.l.b16 %v1420
        %v1917 = vunpack.c.l.b16 %v1421
        %v1918 = vunpack.c.h.b16 %v1420
        %v1919 = vunpack.c.h.b16 %v1421
        %v1920 = vunpack.c.l.b16 %v1422
        %v1921 = vunpack.c.l.b16 %v1423
        %v1922 = vunpack.c.h.b16 %v1422
        %v1923 = vunpack.c.h.b16 %v1423
        %v1924 = vunpack.c.l.b16 %v1424
        %v1925 = vunpack.c.l.b16 %v1425
        %v1926 = vunpack.c.h.b16 %v1424
        %v1927 = vunpack.c.h.b16 %v1425
        %v1928 = vunpack.c.l.b16 %v1426
        %v1929 = vunpack.c.l.b16 %v1427
        %v1930 = vunpack.c.h.b16 %v1426
        %v1931 = vunpack.c.h.b16 %v1427
        %v1932 = vunpack.c.l.b16 %v1428
        %v1933 = vunpack.c.l.b16 %v1429
        %v1934 = vunpack.c.h.b16 %v1428
        %v1935 = vunpack.c.h.b16 %v1429
        %v1936 = vunpack.c.l.b16 %v1430
        %v1937 = vunpack.c.l.b16 %v1431
        %v1938 = vunpack.c.h.b16 %v1430
        %v1939 = vunpack.c.h.b16 %v1431
        %v1940 = vunpack.c.l.b16 %v1432
        %v1941 = vunpack.c.l.b16 %v1433
        %v1942 = vunpack.c.h.b16 %v1432
        %v1943 = vunpack.c.h.b16 %v1433
        %v1944 = vunpack.c.l.b16 %v1434
        %v1945 = vunpack.c.l.b16 %v1435
        %v1946 = vunpack.c.h.b16 %v1434
        %v1947 = vunpack.c.h.b16 %v1435
        %v1948 = vunpack.c.l.b16 %v1436
        %v1949 = vunpack.c.l.b16 %v1437
        %v1950 = vunpack.c.h.b16 %v1436
        %v1951 = vunpack.c.h.b16 %v1437
        %v1952 = vunpack.c.l.b16 %v1438
        %v1953 = vunpack.c.l.b16 %v1439
        %v1954 = vunpack.c.h.b16 %v1438
        %v1955 = vunpack.c.h.b16 %v1439
        %v1956 = vpack.c.b16 %v1893, %v1892
        %v1957 = vpack.c.b16 %v1895, %v1894
        %v1958 = vpack.c.b16 %v1897, %v1896
        %v1959 = vpack.c.b16 %v1899, %v1898
        %v1960 = vpack.c.b16 %v1901, %v1900
        %v1961 = vpack.c.b16 %v1903, %v1902
        %v1962 = vpack.c.b16 %v1905, %v1904
        %v1963 = vpack.c.b16 %v1907, %v1906
        %v1964 = vpack.c.b16 %v1909, %v1908
        %v1965 = vpack.c.b16 %v1911, %v1910
        %v1966 = vpack.c.b16 %v1913, %v1912
        %v1967 = vpack.c.b16 %v1915, %v1914
        %v1968 = vpack.c.b16 %v1917, %v1916
        %v1969 = vpack.c.b16 %v1919, %v1918
        %v1970 = vpack.c.b16 %v1921, %v1920
        %v1971 = vpack.c.b16 %v1923, %v1922
        %v1972 = vpack.c.b16 %v1925, %v1924
        %v1973 = vpack.c.b16 %v1927, %v1926
        %v1974 = vpack.c.b16 %v1929, %v1928
        %v1975 = vpack.c.b16 %v1931, %v1930
        %v1976 = vpack.c.b16 %v1933, %v1932
        %v1977 = vpack.c.b16 %v1935, %v1934
        %v1978 = vpack.c.b16 %v1937, %v1936
        %v1979 = vpack.c.b16 %v1939, %v1938
        %v1980 = vpack.c.b16 %v1941, %v1940
        %v1981 = vpack.c.b16 %v1943, %v1942
        %v1982 = vpack.c.b16 %v1945, %v1944
        %v1983 = vpack.c.b16 %v1947, %v1946
        %v1984 = vpack.c.b16 %v1949, %v1948
        %v1985 = vpack.c.b16 %v1951, %v1950
        %v1986 = vpack.c.b16 %v1953, %v1952
        %v1987 = vpack.c.b16 %v1955, %v1954
        %2020 = vst [vmem:[%s340] sm:$0xff] %v1956
        %2021 = vst [vmem:[%s340 + $0x8] sm:$0xff] %v1957
        %2022 = vst [vmem:[%s340 + $0x10] sm:$0xff] %v1958
        %2023 = vst [vmem:[%s340 + $0x18] sm:$0xff] %v1959
        %2024 = vst [vmem:[%s340 + $0x20] sm:$0xff] %v1960
        %2025 = vst [vmem:[%s340 + $0x28] sm:$0xff] %v1961
        %2026 = vst [vmem:[%s340 + $0x30] sm:$0xff] %v1962
        %2027 = vst [vmem:[%s340 + $0x38] sm:$0xff] %v1963
        %2028 = vst [vmem:[%s340 + $0x40] sm:$0xff] %v1964
        %2029 = vst [vmem:[%s340 + $0x48] sm:$0xff] %v1965
        %2030 = vst [vmem:[%s340 + $0x50] sm:$0xff] %v1966
        %2031 = vst [vmem:[%s340 + $0x58] sm:$0xff] %v1967
        %2032 = vst [vmem:[%s340 + $0x60] sm:$0xff] %v1968
        %2033 = vst [vmem:[%s340 + $0x68] sm:$0xff] %v1969
        %2034 = vst [vmem:[%s340 + $0x70] sm:$0xff] %v1970
        %2035 = vst [vmem:[%s340 + $0x78] sm:$0xff] %v1971
        %2036 = vst [vmem:[%s340 + $0x80] sm:$0xff] %v1972
        %2037 = vst [vmem:[%s340 + $0x88] sm:$0xff] %v1973
        %2038 = vst [vmem:[%s340 + $0x90] sm:$0xff] %v1974
        %2039 = vst [vmem:[%s340 + $0x98] sm:$0xff] %v1975
        %2040 = vst [vmem:[%s340 + $0xa0] sm:$0xff] %v1976
        %2041 = vst [vmem:[%s340 + $0xa8] sm:$0xff] %v1977
        %2042 = vst [vmem:[%s340 + $0xb0] sm:$0xff] %v1978
        %2043 = vst [vmem:[%s340 + $0xb8] sm:$0xff] %v1979
        %2044 = vst [vmem:[%s340 + $0xc0] sm:$0xff] %v1980
        %2045 = vst [vmem:[%s340 + $0xc8] sm:$0xff] %v1981
        %2046 = vst [vmem:[%s340 + $0xd0] sm:$0xff] %v1982
        %2047 = vst [vmem:[%s340 + $0xd8] sm:$0xff] %v1983
        %2048 = vst [vmem:[%s340 + $0xe0] sm:$0xff] %v1984
        %2049 = vst [vmem:[%s340 + $0xe8] sm:$0xff] %v1985
        %2050 = vst [vmem:[%s340 + $0xf0] sm:$0xff] %v1986
        %2051 = vst [vmem:[%s340 + $0xf8] sm:$0xff] %v1987
        %s2052 = smul.u32 32, %s27
        %p2053 = scmp.lt.s32.totalorder %s26, 1
        %s2054 = scalar_select %p2053, %s26, 1
        %p2055 = scmp.lt.s32.totalorder %s2052, 31
        %s2056 = scalar_select %p2055, %s2052, 31
        %s2057 = smul.addr %s2054, 32
        %s2058 = sadd.s32 %s2056, %s2057
        %s2059 = smul.addr %s2058, 8
        %s2060 = scalar_lea.vmem %s5, %s2059
        %s2061 = sand.u32 %s201, 1
        %s2062 = scalar_lea.sflag [#allocation4], %s2061
        %s2063 = sand.u32 %s201, 1
        %s2064 = smul.addr %s2063, 256
        %s2065 = scalar_lea.vmem [#allocation3], %s2064
        // Predicated region
        $region41: #{tpu_custom_call.1} parent=39 // pred_check
          %p2066 = pneg %p183
        $region42: #{tpu_custom_call.1} parent=39 // pred_check_branch
          %2068 = sbr.rel (%p2066) target = $region44
        $region43: #{tpu_custom_call.1} parent=39 // pred_region
          %s2069 = smul.u32 32, %s27
        $region44: #{tpu_custom_call.1} parent=39 // pred_fallthru
          _
        // Predicated region
        $region45: #{tpu_custom_call.1} parent=39 // pred_check
          %p2070 = pneg %p211
        $region46: #{tpu_custom_call.1} parent=39 // pred_check_branch
          %2072 = sbr.rel (%p2070) target = $region48
        $region47: #{tpu_custom_call.1} parent=39 // pred_region
          %s2073 = smul.u32 32, %s27
          %s2075 = ssub.s32 4096, 4096
          %2076 = vsyncadd %s2062, %s2075
          %s2077 = smul.addr %s2073, 2
          %s2078 = smul.addr %s26, 64
          %s2079 = sadd.s32 %s2077, %s2078
          %s2080 = smul.addr %s2079, 64
          %s2081 = scalar_lea.hbm %s6, %s2080
          %s2082 = sshll.u32 %s2065, 4
          %s2083 = int_to_ptr.vmem [resolvable:$true] %s2082
          %2088 = dma.vmem_to_hbm [thread:$0]  %s2083, 4096, %s2081, %s2062, 128, 128, 8
        $region48: #{tpu_custom_call.1} parent=39 // pred_fallthru
          _
      $region40: #{tpu_custom_call.1} parent=5 // pred_fallthru
        _
      %p2089 = scmp.le.s32.totalorder 2, %s17
      // Predicated region
      $region49: #{tpu_custom_call.1} parent=5 // pred_check
        %p2090 = pneg %p2089
      $region50: #{tpu_custom_call.1} parent=5 // pred_check_branch
        %2092 = sbr.rel (%p2090) target = $region52
      $region51: #{tpu_custom_call.1} parent=5 // pred_region
        %s2093 = ssub.s32 %s17, 2
        // Predicated region
        $region53: #{tpu_custom_call.1} parent=51 // pred_check
          %p2094 = pneg %p189
        $region54: #{tpu_custom_call.1} parent=51 // pred_check_branch
          %2096 = sbr.rel (%p2094) target = $region56
        $region55: #{tpu_custom_call.1} parent=51 // pred_region
          %s2097 = smul.u32 32, %s29
          %p2098 = scmp.lt.s32.totalorder %s28, 1
          %s2099 = scalar_select %p2098, %s28, 1
          %p2100 = scmp.lt.s32.totalorder %s2097, 31
          %s2101 = scalar_select %p2100, %s2097, 31
          %s2102 = smul.addr %s2099, 32
          %s2103 = sadd.s32 %s2101, %s2102
          %s2104 = smul.addr %s2103, 8
          %s2105 = scalar_lea.vmem %s5, %s2104
        $region56: #{tpu_custom_call.1} parent=51 // pred_fallthru
          _
        // Predicated region
        $region57: #{tpu_custom_call.1} parent=51 // pred_check
          %p2106 = pneg %p217
        $region58: #{tpu_custom_call.1} parent=51 // pred_check_branch
          %2108 = sbr.rel (%p2106) target = $region60
        $region59: #{tpu_custom_call.1} parent=51 // pred_region
          %s2109 = sand.u32 %s202, 1
          %s2110 = scalar_lea.sflag [#allocation4], %s2109
          %s2111 = sand.u32 %s202, 1
          %s2112 = smul.addr %s2111, 256
          %s2113 = scalar_lea.vmem [#allocation3], %s2112
          %2114 = dma.done %s2110, 4096
        $region60: #{tpu_custom_call.1} parent=51 // pred_fallthru
          _
      $region52: #{tpu_custom_call.1} parent=5 // pred_fallthru
        _
    $region6: #{tpu_custom_call.1} parent=1 // loop_footer
      %s21 = sadd.s32 1, %s17
    $region7: #{tpu_custom_call.1} parent=1 // loop_footer_branch
      %16 = sbr.rel target = $region3
    $region8: #{tpu_custom_call.1} parent=1 // loop_exit
      _
    %2115 = vsyncpa [#allocation4], 1
    %s2116 = scalar_lea.sflag [#allocation4], 1
    %2117 = vsyncpa %s2116, 1

</llo_original>
